<compile_context>
chip_gen: v7x
topology: tpu7x:2x2x1
jax: 0.10.0
libtpu: 0.0.40
codegen_flags: <defaults>
</compile_context>

<pallas_src>
import jax
import jax.numpy as jnp
from jax import lax
from jax.experimental import pallas as pl
from jax.experimental.pallas import tpu as pltpu

EPS = 1e-5


def _basic_block_kernel(x_ref, w1_ref, g1_ref, b1_ref, w2_ref, g2_ref, b2_ref, o_ref):
    """Fused channels-first BasicBlock: conv1 -> bn1 -> relu -> conv2 -> bn2 -> +x -> relu.

    x_ref : (N, C, L) f32 VMEM   -- PyTorch layout kept as-is, L on the lane axis
    w*_ref: (P*C*3,)  f32 SMEM   -- flattened PyTorch (O, I, K) conv weights, idx=(o*C+i)*3+k
    g*,b* : (P,)      f32 SMEM   -- BatchNorm gamma / beta
    o_ref : (N, P, L) f32 VMEM
    """
    N, C, L = x_ref.shape
    P = o_ref.shape[1]
    inv_n = 1.0 / float(N * L)

    x = x_ref[...]

    # --- boundary masks for the padding=1 taps: built ONCE, reused by both convs ---
    l_idx = lax.broadcasted_iota(jnp.int32, (1, L), 1)
    is_first = l_idx == 0
    is_last = l_idx == L - 1

    def taps(v):
        """(N, L) slab -> (v[l-1], v[l], v[l+1]) with zero padding at the edges."""
        vm = jnp.where(is_first, 0.0, pltpu.roll(v, shift=1, axis=1))      # v[l-1]
        vp = jnp.where(is_last, 0.0, pltpu.roll(v, shift=L - 1, axis=1))   # v[l+1]
        return vm, v, vp

    def conv3(chan_slabs, w_ref, n_in, n_out):
        """3-tap shift-add conv on the VPU: n_out*n_in*3 scalar-broadcast FMAs (no MXU)."""
        tap_slabs = [taps(c) for c in chan_slabs]          # 2 rolls + 2 masks per input chan
        outs = []
        for o in range(n_out):
            acc = None
            for i in range(n_in):
                base = (o * n_in + i) * 3                  # PyTorch (O, I, K) row-major
                vm, v0, vp = tap_slabs[i]
                term = w_ref[base] * vm + w_ref[base + 1] * v0 + w_ref[base + 2] * vp
                acc = term if acc is None else acc + term
            outs.append(acc)
        return outs

    def bn_train(h, gamma, beta):
        """Training-mode BatchNorm1d for one channel: two-pass (centered) batch stats."""
        mean = jnp.sum(h, keepdims=True) * inv_n                 # (1, 1)
        d = h - mean
        var = jnp.sum(d * d, keepdims=True) * inv_n              # biased variance, >= 0
        return d * (gamma * lax.rsqrt(var + EPS)) + beta         # fused scale/shift

    x_chans = [x[:, i, :] for i in range(C)]                     # per-channel (N, L) slabs

    # ---- conv1 -> bn1 -> relu ----
    h = conv3(x_chans, w1_ref, C, P)
    h = [jnp.maximum(bn_train(h[o], g1_ref[o], b1_ref[o]), 0.0) for o in range(P)]

    # ---- conv2 -> bn2 -> residual add (identity = x) -> relu ----
    out = conv3(h, w2_ref, P, P)
    out = [jnp.maximum(bn_train(out[o], g2_ref[o], b2_ref[o]) + x_chans[o], 0.0)
           for o in range(P)]

    o_ref[...] = jnp.stack(out, axis=1).astype(o_ref.dtype)


def basic_block_pallas(x_ncl, w1, g1, b1, w2, g2, b2):
    """x_ncl: (N, C, L) float32 (PyTorch layout). Conv weights in PyTorch (O, I, K) layout."""
    N, C, L = x_ncl.shape
    P = w1.shape[0]
    assert w1.shape == (P, C, 3) and w2.shape == (P, P, 3)
    assert P == C, "downsample is None -> inplanes == planes"

    # Flatten conv weights (row-major (O, I, K)) for SMEM scalar reads; no layout transposes.
    w1_flat = w1.reshape(-1).astype(jnp.float32)
    w2_flat = w2.reshape(-1).astype(jnp.float32)

    vmem = pl.BlockSpec(memory_space=pltpu.MemorySpace.VMEM)
    smem = pl.BlockSpec(memory_space=pltpu.MemorySpace.SMEM)

    conv_flops = 2 * 3 * N * L * (C * P + P * P)
    cost = pl.CostEstimate(
        flops=conv_flops + 10 * N * P * L,
        transcendentals=2 * P,
        bytes_accessed=2 * N * C * L * 4 + (w1_flat.size + w2_flat.size + 4 * P) * 4,
    )

    return pl.pallas_call(
        _basic_block_kernel,
        out_shape=jax.ShapeDtypeStruct((N, P, L), x_ncl.dtype),
        in_specs=[vmem, smem, smem, smem, smem, smem, smem],
        out_specs=vmem,
        input_output_aliases={0: 0},   # out reuses x's HBM buffer when x is donatable
        cost_estimate=cost,
        compiler_params=pltpu.CompilerParams(vmem_limit_bytes=32 * 1024 * 1024),
    )(x_ncl, w1_flat, g1.astype(jnp.float32), b1.astype(jnp.float32),
      w2_flat, g2.astype(jnp.float32), b2.astype(jnp.float32))


def basic_block_ref(x_ncl, w1, g1, b1, w2, g2, b2):
    """Pure-JAX f32 reference (two-pass BN, explicit zero-padded conv)."""
    def conv(x, w):  # x: (N, C, L), w: (O, I, 3), padding=1
        Lx = x.shape[-1]
        xp = jnp.pad(x, ((0, 0), (0, 0), (1, 1)))
        return sum(jnp.einsum('nil,oi->nol', xp[:, :, k:k + Lx], w[:, :, k]) for k in range(3))

    def bn(h, g, b):
        m = jnp.mean(h, axis=(0, 2), keepdims=True)
        v = jnp.mean((h - m) ** 2, axis=(0, 2), keepdims=True)
        return (h - m) / jnp.sqrt(v + EPS) * g.reshape(1, -1, 1) + b.reshape(1, -1, 1)

    h = jnp.maximum(bn(conv(x_ncl, w1), g1, b1), 0.0)
    o = bn(conv(h, w2), g2, b2)
    return jnp.maximum(o + x_ncl, 0.0)


if __name__ == "__main__":
    # small shapes consistent with the module: N=2, inplanes=planes=4, L=16
    N, C, L = 2, 4, 16
    P = C  # planes == inplanes (stride=1, downsample=None)

    key = jax.random.PRNGKey(0)
    kx, k1, k2 = jax.random.split(key, 3)
    x = jax.random.normal(kx, (N, C, L), jnp.float32)

    # deterministic synthetic parameters (PyTorch conv weight layout (O, I, K))
    w1 = jax.random.normal(k1, (P, C, 3), jnp.float32) * 0.2
    w2 = jax.random.normal(k2, (P, P, 3), jnp.float32) * 0.2
    g1 = 1.0 + 0.1 * jnp.arange(P, dtype=jnp.float32)
    b1 = 0.05 * jnp.arange(P, dtype=jnp.float32)
    g2 = 1.0 - 0.05 * jnp.arange(P, dtype=jnp.float32)
    b2 = -0.02 * jnp.arange(P, dtype=jnp.float32)

    # reference first (the kernel may alias/donate x's buffer)
    ref = basic_block_ref(x, w1, g1, b1, w2, g2, b2)
    out = jax.block_until_ready(basic_block_pallas(x, w1, g1, b1, w2, g2, b2))

    assert out.shape == (N, C, L)
    err = float(jnp.max(jnp.abs(out - ref)))
    assert jnp.allclose(out, ref, atol=1e-3, rtol=1e-3), err

    print("KERNEL_OK")
</pallas_src>

<mosaic_0001>
module attributes {stable_mosaic.version = 11 : i64} {
  func.func @_basic_block_kernel(%arg0: memref<2x4x16xf32, #tpu.memory_space<vmem>>, %arg1: memref<48xf32, #tpu.memory_space<smem>>, %arg2: memref<4xf32, #tpu.memory_space<smem>>, %arg3: memref<4xf32, #tpu.memory_space<smem>>, %arg4: memref<48xf32, #tpu.memory_space<smem>>, %arg5: memref<4xf32, #tpu.memory_space<smem>>, %arg6: memref<4xf32, #tpu.memory_space<smem>>, %arg7: memref<2x4x16xf32, #tpu.memory_space<vmem>>) attributes {dimension_semantics = [], scalar_prefetch = 0 : i64, scratch_operands = 0 : i64, tpu.core_type = #tpu.core_type<tc>} {
    %c0 = arith.constant 0 : index
    %c0_0 = arith.constant 0 : index
    %c0_1 = arith.constant 0 : index
    %0 = vector.load %arg0[%c0, %c0_0, %c0_1] : memref<2x4x16xf32, #tpu.memory_space<vmem>>, vector<2x4x16xf32>
    %1 = tpu.iota {dimensions = array<i32: 1>} : vector<1x16xi32>
    %c0_i32 = arith.constant 0 : i32
    %2 = vector.broadcast %c0_i32 : i32 to vector<1x16xi32>
    %3 = arith.cmpi eq, %1, %2 : vector<1x16xi32>
    %c15_i32 = arith.constant 15 : i32
    %4 = vector.broadcast %c15_i32 : i32 to vector<1x16xi32>
    %5 = arith.cmpi eq, %1, %4 : vector<1x16xi32>
    %6 = vector.extract_strided_slice %0 {offsets = [0, 0, 0], sizes = [2, 1, 16], strides = [1, 1, 1]} : vector<2x4x16xf32> to vector<2x1x16xf32>
    %7 = vector.shape_cast %6 : vector<2x1x16xf32> to vector<2x16xf32>
    %8 = vector.extract_strided_slice %0 {offsets = [0, 1, 0], sizes = [2, 1, 16], strides = [1, 1, 1]} : vector<2x4x16xf32> to vector<2x1x16xf32>
    %9 = vector.shape_cast %8 : vector<2x1x16xf32> to vector<2x16xf32>
    %10 = vector.extract_strided_slice %0 {offsets = [0, 2, 0], sizes = [2, 1, 16], strides = [1, 1, 1]} : vector<2x4x16xf32> to vector<2x1x16xf32>
    %11 = vector.shape_cast %10 : vector<2x1x16xf32> to vector<2x16xf32>
    %12 = vector.extract_strided_slice %0 {offsets = [0, 3, 0], sizes = [2, 1, 16], strides = [1, 1, 1]} : vector<2x4x16xf32> to vector<2x1x16xf32>
    %13 = vector.shape_cast %12 : vector<2x1x16xf32> to vector<2x16xf32>
    %c1_i32 = arith.constant 1 : i32
    %14 = tpu.dynamic_rotate %7 by %c1_i32 dim 1 : vector<2x16xf32>, i32 -> vector<2x16xf32>
    %cst = arith.constant 0.000000e+00 : f32
    %15 = vector.shape_cast %3 : vector<1x16xi1> to vector<1x16xi1>
    %16 = vector.broadcast %15 : vector<1x16xi1> to vector<2x16xi1>
    %17 = vector.broadcast %cst : f32 to vector<2x16xf32>
    %18 = arith.select %16, %17, %14 : vector<2x16xi1>, vector<2x16xf32>
    %c15_i32_2 = arith.constant 15 : i32
    %19 = tpu.dynamic_rotate %7 by %c15_i32_2 dim 1 : vector<2x16xf32>, i32 -> vector<2x16xf32>
    %cst_3 = arith.constant 0.000000e+00 : f32
    %20 = vector.shape_cast %5 : vector<1x16xi1> to vector<1x16xi1>
    %21 = vector.broadcast %20 : vector<1x16xi1> to vector<2x16xi1>
    %22 = vector.broadcast %cst_3 : f32 to vector<2x16xf32>
    %23 = arith.select %21, %22, %19 : vector<2x16xi1>, vector<2x16xf32>
    %c1_i32_4 = arith.constant 1 : i32
    %24 = tpu.dynamic_rotate %9 by %c1_i32_4 dim 1 : vector<2x16xf32>, i32 -> vector<2x16xf32>
    %cst_5 = arith.constant 0.000000e+00 : f32
    %25 = vector.shape_cast %3 : vector<1x16xi1> to vector<1x16xi1>
    %26 = vector.broadcast %25 : vector<1x16xi1> to vector<2x16xi1>
    %27 = vector.broadcast %cst_5 : f32 to vector<2x16xf32>
    %28 = arith.select %26, %27, %24 : vector<2x16xi1>, vector<2x16xf32>
    %c15_i32_6 = arith.constant 15 : i32
    %29 = tpu.dynamic_rotate %9 by %c15_i32_6 dim 1 : vector<2x16xf32>, i32 -> vector<2x16xf32>
    %cst_7 = arith.constant 0.000000e+00 : f32
    %30 = vector.shape_cast %5 : vector<1x16xi1> to vector<1x16xi1>
    %31 = vector.broadcast %30 : vector<1x16xi1> to vector<2x16xi1>
    %32 = vector.broadcast %cst_7 : f32 to vector<2x16xf32>
    %33 = arith.select %31, %32, %29 : vector<2x16xi1>, vector<2x16xf32>
    %c1_i32_8 = arith.constant 1 : i32
    %34 = tpu.dynamic_rotate %11 by %c1_i32_8 dim 1 : vector<2x16xf32>, i32 -> vector<2x16xf32>
    %cst_9 = arith.constant 0.000000e+00 : f32
    %35 = vector.shape_cast %3 : vector<1x16xi1> to vector<1x16xi1>
    %36 = vector.broadcast %35 : vector<1x16xi1> to vector<2x16xi1>
    %37 = vector.broadcast %cst_9 : f32 to vector<2x16xf32>
    %38 = arith.select %36, %37, %34 : vector<2x16xi1>, vector<2x16xf32>
    %c15_i32_10 = arith.constant 15 : i32
    %39 = tpu.dynamic_rotate %11 by %c15_i32_10 dim 1 : vector<2x16xf32>, i32 -> vector<2x16xf32>
    %cst_11 = arith.constant 0.000000e+00 : f32
    %40 = vector.shape_cast %5 : vector<1x16xi1> to vector<1x16xi1>
    %41 = vector.broadcast %40 : vector<1x16xi1> to vector<2x16xi1>
    %42 = vector.broadcast %cst_11 : f32 to vector<2x16xf32>
    %43 = arith.select %41, %42, %39 : vector<2x16xi1>, vector<2x16xf32>
    %c1_i32_12 = arith.constant 1 : i32
    %44 = tpu.dynamic_rotate %13 by %c1_i32_12 dim 1 : vector<2x16xf32>, i32 -> vector<2x16xf32>
    %cst_13 = arith.constant 0.000000e+00 : f32
    %45 = vector.shape_cast %3 : vector<1x16xi1> to vector<1x16xi1>
    %46 = vector.broadcast %45 : vector<1x16xi1> to vector<2x16xi1>
    %47 = vector.broadcast %cst_13 : f32 to vector<2x16xf32>
    %48 = arith.select %46, %47, %44 : vector<2x16xi1>, vector<2x16xf32>
    %c15_i32_14 = arith.constant 15 : i32
    %49 = tpu.dynamic_rotate %13 by %c15_i32_14 dim 1 : vector<2x16xf32>, i32 -> vector<2x16xf32>
    %cst_15 = arith.constant 0.000000e+00 : f32
    %50 = vector.shape_cast %5 : vector<1x16xi1> to vector<1x16xi1>
    %51 = vector.broadcast %50 : vector<1x16xi1> to vector<2x16xi1>
    %52 = vector.broadcast %cst_15 : f32 to vector<2x16xf32>
    %53 = arith.select %51, %52, %49 : vector<2x16xi1>, vector<2x16xf32>
    %c0_16 = arith.constant 0 : index
    %54 = memref.load %arg1[%c0_16] : memref<48xf32, #tpu.memory_space<smem>>
    %55 = vector.broadcast %54 : f32 to vector<2x16xf32>
    %56 = arith.mulf %55, %18 : vector<2x16xf32>
    %c1 = arith.constant 1 : index
    %57 = memref.load %arg1[%c1] : memref<48xf32, #tpu.memory_space<smem>>
    %58 = vector.broadcast %57 : f32 to vector<2x16xf32>
    %59 = arith.mulf %58, %7 : vector<2x16xf32>
    %60 = arith.addf %56, %59 : vector<2x16xf32>
    %c2 = arith.constant 2 : index
    %61 = memref.load %arg1[%c2] : memref<48xf32, #tpu.memory_space<smem>>
    %62 = vector.broadcast %61 : f32 to vector<2x16xf32>
    %63 = arith.mulf %62, %23 : vector<2x16xf32>
    %64 = arith.addf %60, %63 : vector<2x16xf32>
    %c3 = arith.constant 3 : index
    %65 = memref.load %arg1[%c3] : memref<48xf32, #tpu.memory_space<smem>>
    %66 = vector.broadcast %65 : f32 to vector<2x16xf32>
    %67 = arith.mulf %66, %28 : vector<2x16xf32>
    %c4 = arith.constant 4 : index
    %68 = memref.load %arg1[%c4] : memref<48xf32, #tpu.memory_space<smem>>
    %69 = vector.broadcast %68 : f32 to vector<2x16xf32>
    %70 = arith.mulf %69, %9 : vector<2x16xf32>
    %71 = arith.addf %67, %70 : vector<2x16xf32>
    %c5 = arith.constant 5 : index
    %72 = memref.load %arg1[%c5] : memref<48xf32, #tpu.memory_space<smem>>
    %73 = vector.broadcast %72 : f32 to vector<2x16xf32>
    %74 = arith.mulf %73, %33 : vector<2x16xf32>
    %75 = arith.addf %71, %74 : vector<2x16xf32>
    %76 = arith.addf %64, %75 : vector<2x16xf32>
    %c6 = arith.constant 6 : index
    %77 = memref.load %arg1[%c6] : memref<48xf32, #tpu.memory_space<smem>>
    %78 = vector.broadcast %77 : f32 to vector<2x16xf32>
    %79 = arith.mulf %78, %38 : vector<2x16xf32>
    %c7 = arith.constant 7 : index
    %80 = memref.load %arg1[%c7] : memref<48xf32, #tpu.memory_space<smem>>
    %81 = vector.broadcast %80 : f32 to vector<2x16xf32>
    %82 = arith.mulf %81, %11 : vector<2x16xf32>
    %83 = arith.addf %79, %82 : vector<2x16xf32>
    %c8 = arith.constant 8 : index
    %84 = memref.load %arg1[%c8] : memref<48xf32, #tpu.memory_space<smem>>
    %85 = vector.broadcast %84 : f32 to vector<2x16xf32>
    %86 = arith.mulf %85, %43 : vector<2x16xf32>
    %87 = arith.addf %83, %86 : vector<2x16xf32>
    %88 = arith.addf %76, %87 : vector<2x16xf32>
    %c9 = arith.constant 9 : index
    %89 = memref.load %arg1[%c9] : memref<48xf32, #tpu.memory_space<smem>>
    %90 = vector.broadcast %89 : f32 to vector<2x16xf32>
    %91 = arith.mulf %90, %48 : vector<2x16xf32>
    %c10 = arith.constant 10 : index
    %92 = memref.load %arg1[%c10] : memref<48xf32, #tpu.memory_space<smem>>
    %93 = vector.broadcast %92 : f32 to vector<2x16xf32>
    %94 = arith.mulf %93, %13 : vector<2x16xf32>
    %95 = arith.addf %91, %94 : vector<2x16xf32>
    %c11 = arith.constant 11 : index
    %96 = memref.load %arg1[%c11] : memref<48xf32, #tpu.memory_space<smem>>
    %97 = vector.broadcast %96 : f32 to vector<2x16xf32>
    %98 = arith.mulf %97, %53 : vector<2x16xf32>
    %99 = arith.addf %95, %98 : vector<2x16xf32>
    %100 = arith.addf %88, %99 : vector<2x16xf32>
    %c12 = arith.constant 12 : index
    %101 = memref.load %arg1[%c12] : memref<48xf32, #tpu.memory_space<smem>>
    %102 = vector.broadcast %101 : f32 to vector<2x16xf32>
    %103 = arith.mulf %102, %18 : vector<2x16xf32>
    %c13 = arith.constant 13 : index
    %104 = memref.load %arg1[%c13] : memref<48xf32, #tpu.memory_space<smem>>
    %105 = vector.broadcast %104 : f32 to vector<2x16xf32>
    %106 = arith.mulf %105, %7 : vector<2x16xf32>
    %107 = arith.addf %103, %106 : vector<2x16xf32>
    %c14 = arith.constant 14 : index
    %108 = memref.load %arg1[%c14] : memref<48xf32, #tpu.memory_space<smem>>
    %109 = vector.broadcast %108 : f32 to vector<2x16xf32>
    %110 = arith.mulf %109, %23 : vector<2x16xf32>
    %111 = arith.addf %107, %110 : vector<2x16xf32>
    %c15 = arith.constant 15 : index
    %112 = memref.load %arg1[%c15] : memref<48xf32, #tpu.memory_space<smem>>
    %113 = vector.broadcast %112 : f32 to vector<2x16xf32>
    %114 = arith.mulf %113, %28 : vector<2x16xf32>
    %c16 = arith.constant 16 : index
    %115 = memref.load %arg1[%c16] : memref<48xf32, #tpu.memory_space<smem>>
    %116 = vector.broadcast %115 : f32 to vector<2x16xf32>
    %117 = arith.mulf %116, %9 : vector<2x16xf32>
    %118 = arith.addf %114, %117 : vector<2x16xf32>
    %c17 = arith.constant 17 : index
    %119 = memref.load %arg1[%c17] : memref<48xf32, #tpu.memory_space<smem>>
    %120 = vector.broadcast %119 : f32 to vector<2x16xf32>
    %121 = arith.mulf %120, %33 : vector<2x16xf32>
    %122 = arith.addf %118, %121 : vector<2x16xf32>
    %123 = arith.addf %111, %122 : vector<2x16xf32>
    %c18 = arith.constant 18 : index
    %124 = memref.load %arg1[%c18] : memref<48xf32, #tpu.memory_space<smem>>
    %125 = vector.broadcast %124 : f32 to vector<2x16xf32>
    %126 = arith.mulf %125, %38 : vector<2x16xf32>
    %c19 = arith.constant 19 : index
    %127 = memref.load %arg1[%c19] : memref<48xf32, #tpu.memory_space<smem>>
    %128 = vector.broadcast %127 : f32 to vector<2x16xf32>
    %129 = arith.mulf %128, %11 : vector<2x16xf32>
    %130 = arith.addf %126, %129 : vector<2x16xf32>
    %c20 = arith.constant 20 : index
    %131 = memref.load %arg1[%c20] : memref<48xf32, #tpu.memory_space<smem>>
    %132 = vector.broadcast %131 : f32 to vector<2x16xf32>
    %133 = arith.mulf %132, %43 : vector<2x16xf32>
    %134 = arith.addf %130, %133 : vector<2x16xf32>
    %135 = arith.addf %123, %134 : vector<2x16xf32>
    %c21 = arith.constant 21 : index
    %136 = memref.load %arg1[%c21] : memref<48xf32, #tpu.memory_space<smem>>
    %137 = vector.broadcast %136 : f32 to vector<2x16xf32>
    %138 = arith.mulf %137, %48 : vector<2x16xf32>
    %c22 = arith.constant 22 : index
    %139 = memref.load %arg1[%c22] : memref<48xf32, #tpu.memory_space<smem>>
    %140 = vector.broadcast %139 : f32 to vector<2x16xf32>
    %141 = arith.mulf %140, %13 : vector<2x16xf32>
    %142 = arith.addf %138, %141 : vector<2x16xf32>
    %c23 = arith.constant 23 : index
    %143 = memref.load %arg1[%c23] : memref<48xf32, #tpu.memory_space<smem>>
    %144 = vector.broadcast %143 : f32 to vector<2x16xf32>
    %145 = arith.mulf %144, %53 : vector<2x16xf32>
    %146 = arith.addf %142, %145 : vector<2x16xf32>
    %147 = arith.addf %135, %146 : vector<2x16xf32>
    %c24 = arith.constant 24 : index
    %148 = memref.load %arg1[%c24] : memref<48xf32, #tpu.memory_space<smem>>
    %149 = vector.broadcast %148 : f32 to vector<2x16xf32>
    %150 = arith.mulf %149, %18 : vector<2x16xf32>
    %c25 = arith.constant 25 : index
    %151 = memref.load %arg1[%c25] : memref<48xf32, #tpu.memory_space<smem>>
    %152 = vector.broadcast %151 : f32 to vector<2x16xf32>
    %153 = arith.mulf %152, %7 : vector<2x16xf32>
    %154 = arith.addf %150, %153 : vector<2x16xf32>
    %c26 = arith.constant 26 : index
    %155 = memref.load %arg1[%c26] : memref<48xf32, #tpu.memory_space<smem>>
    %156 = vector.broadcast %155 : f32 to vector<2x16xf32>
    %157 = arith.mulf %156, %23 : vector<2x16xf32>
    %158 = arith.addf %154, %157 : vector<2x16xf32>
    %c27 = arith.constant 27 : index
    %159 = memref.load %arg1[%c27] : memref<48xf32, #tpu.memory_space<smem>>
    %160 = vector.broadcast %159 : f32 to vector<2x16xf32>
    %161 = arith.mulf %160, %28 : vector<2x16xf32>
    %c28 = arith.constant 28 : index
    %162 = memref.load %arg1[%c28] : memref<48xf32, #tpu.memory_space<smem>>
    %163 = vector.broadcast %162 : f32 to vector<2x16xf32>
    %164 = arith.mulf %163, %9 : vector<2x16xf32>
    %165 = arith.addf %161, %164 : vector<2x16xf32>
    %c29 = arith.constant 29 : index
    %166 = memref.load %arg1[%c29] : memref<48xf32, #tpu.memory_space<smem>>
    %167 = vector.broadcast %166 : f32 to vector<2x16xf32>
    %168 = arith.mulf %167, %33 : vector<2x16xf32>
    %169 = arith.addf %165, %168 : vector<2x16xf32>
    %170 = arith.addf %158, %169 : vector<2x16xf32>
    %c30 = arith.constant 30 : index
    %171 = memref.load %arg1[%c30] : memref<48xf32, #tpu.memory_space<smem>>
    %172 = vector.broadcast %171 : f32 to vector<2x16xf32>
    %173 = arith.mulf %172, %38 : vector<2x16xf32>
    %c31 = arith.constant 31 : index
    %174 = memref.load %arg1[%c31] : memref<48xf32, #tpu.memory_space<smem>>
    %175 = vector.broadcast %174 : f32 to vector<2x16xf32>
    %176 = arith.mulf %175, %11 : vector<2x16xf32>
    %177 = arith.addf %173, %176 : vector<2x16xf32>
    %c32 = arith.constant 32 : index
    %178 = memref.load %arg1[%c32] : memref<48xf32, #tpu.memory_space<smem>>
    %179 = vector.broadcast %178 : f32 to vector<2x16xf32>
    %180 = arith.mulf %179, %43 : vector<2x16xf32>
    %181 = arith.addf %177, %180 : vector<2x16xf32>
    %182 = arith.addf %170, %181 : vector<2x16xf32>
    %c33 = arith.constant 33 : index
    %183 = memref.load %arg1[%c33] : memref<48xf32, #tpu.memory_space<smem>>
    %184 = vector.broadcast %183 : f32 to vector<2x16xf32>
    %185 = arith.mulf %184, %48 : vector<2x16xf32>
    %c34 = arith.constant 34 : index
    %186 = memref.load %arg1[%c34] : memref<48xf32, #tpu.memory_space<smem>>
    %187 = vector.broadcast %186 : f32 to vector<2x16xf32>
    %188 = arith.mulf %187, %13 : vector<2x16xf32>
    %189 = arith.addf %185, %188 : vector<2x16xf32>
    %c35 = arith.constant 35 : index
    %190 = memref.load %arg1[%c35] : memref<48xf32, #tpu.memory_space<smem>>
    %191 = vector.broadcast %190 : f32 to vector<2x16xf32>
    %192 = arith.mulf %191, %53 : vector<2x16xf32>
    %193 = arith.addf %189, %192 : vector<2x16xf32>
    %194 = arith.addf %182, %193 : vector<2x16xf32>
    %c36 = arith.constant 36 : index
    %195 = memref.load %arg1[%c36] : memref<48xf32, #tpu.memory_space<smem>>
    %196 = vector.broadcast %195 : f32 to vector<2x16xf32>
    %197 = arith.mulf %196, %18 : vector<2x16xf32>
    %c37 = arith.constant 37 : index
    %198 = memref.load %arg1[%c37] : memref<48xf32, #tpu.memory_space<smem>>
    %199 = vector.broadcast %198 : f32 to vector<2x16xf32>
    %200 = arith.mulf %199, %7 : vector<2x16xf32>
    %201 = arith.addf %197, %200 : vector<2x16xf32>
    %c38 = arith.constant 38 : index
    %202 = memref.load %arg1[%c38] : memref<48xf32, #tpu.memory_space<smem>>
    %203 = vector.broadcast %202 : f32 to vector<2x16xf32>
    %204 = arith.mulf %203, %23 : vector<2x16xf32>
    %205 = arith.addf %201, %204 : vector<2x16xf32>
    %c39 = arith.constant 39 : index
    %206 = memref.load %arg1[%c39] : memref<48xf32, #tpu.memory_space<smem>>
    %207 = vector.broadcast %206 : f32 to vector<2x16xf32>
    %208 = arith.mulf %207, %28 : vector<2x16xf32>
    %c40 = arith.constant 40 : index
    %209 = memref.load %arg1[%c40] : memref<48xf32, #tpu.memory_space<smem>>
    %210 = vector.broadcast %209 : f32 to vector<2x16xf32>
    %211 = arith.mulf %210, %9 : vector<2x16xf32>
    %212 = arith.addf %208, %211 : vector<2x16xf32>
    %c41 = arith.constant 41 : index
    %213 = memref.load %arg1[%c41] : memref<48xf32, #tpu.memory_space<smem>>
    %214 = vector.broadcast %213 : f32 to vector<2x16xf32>
    %215 = arith.mulf %214, %33 : vector<2x16xf32>
    %216 = arith.addf %212, %215 : vector<2x16xf32>
    %217 = arith.addf %205, %216 : vector<2x16xf32>
    %c42 = arith.constant 42 : index
    %218 = memref.load %arg1[%c42] : memref<48xf32, #tpu.memory_space<smem>>
    %219 = vector.broadcast %218 : f32 to vector<2x16xf32>
    %220 = arith.mulf %219, %38 : vector<2x16xf32>
    %c43 = arith.constant 43 : index
    %221 = memref.load %arg1[%c43] : memref<48xf32, #tpu.memory_space<smem>>
    %222 = vector.broadcast %221 : f32 to vector<2x16xf32>
    %223 = arith.mulf %222, %11 : vector<2x16xf32>
    %224 = arith.addf %220, %223 : vector<2x16xf32>
    %c44 = arith.constant 44 : index
    %225 = memref.load %arg1[%c44] : memref<48xf32, #tpu.memory_space<smem>>
    %226 = vector.broadcast %225 : f32 to vector<2x16xf32>
    %227 = arith.mulf %226, %43 : vector<2x16xf32>
    %228 = arith.addf %224, %227 : vector<2x16xf32>
    %229 = arith.addf %217, %228 : vector<2x16xf32>
    %c45 = arith.constant 45 : index
    %230 = memref.load %arg1[%c45] : memref<48xf32, #tpu.memory_space<smem>>
    %231 = vector.broadcast %230 : f32 to vector<2x16xf32>
    %232 = arith.mulf %231, %48 : vector<2x16xf32>
    %c46 = arith.constant 46 : index
    %233 = memref.load %arg1[%c46] : memref<48xf32, #tpu.memory_space<smem>>
    %234 = vector.broadcast %233 : f32 to vector<2x16xf32>
    %235 = arith.mulf %234, %13 : vector<2x16xf32>
    %236 = arith.addf %232, %235 : vector<2x16xf32>
    %c47 = arith.constant 47 : index
    %237 = memref.load %arg1[%c47] : memref<48xf32, #tpu.memory_space<smem>>
    %238 = vector.broadcast %237 : f32 to vector<2x16xf32>
    %239 = arith.mulf %238, %53 : vector<2x16xf32>
    %240 = arith.addf %236, %239 : vector<2x16xf32>
    %241 = arith.addf %229, %240 : vector<2x16xf32>
    %c0_17 = arith.constant 0 : index
    %242 = memref.load %arg2[%c0_17] : memref<4xf32, #tpu.memory_space<smem>>
    %c0_18 = arith.constant 0 : index
    %243 = memref.load %arg3[%c0_18] : memref<4xf32, #tpu.memory_space<smem>>
    %244 = vector.shape_cast %100 : vector<2x16xf32> to vector<1x2x16xf32>
    %cst_19 = arith.constant dense<0.000000e+00> : vector<1xf32>
    %245 = vector.multi_reduction <add>, %244, %cst_19 [1, 2] : vector<1x2x16xf32> to vector<1xf32>
    %246 = vector.shape_cast %245 : vector<1xf32> to vector<1x1x1xf32>
    %247 = vector.extract %246[0, 0, 0] : f32 from vector<1x1x1xf32>
    %248 = vector.broadcast %247 : f32 to vector<1x1xf32>
    %cst_20 = arith.constant 3.125000e-02 : f32
    %249 = vector.broadcast %cst_20 : f32 to vector<1x1xf32>
    %250 = arith.mulf %248, %249 : vector<1x1xf32>
    %251 = vector.broadcast %250 : vector<1x1xf32> to vector<2x16xf32>
    %252 = arith.subf %100, %251 : vector<2x16xf32>
    %253 = arith.mulf %252, %252 : vector<2x16xf32>
    %254 = vector.shape_cast %253 : vector<2x16xf32> to vector<1x2x16xf32>
    %cst_21 = arith.constant dense<0.000000e+00> : vector<1xf32>
    %255 = vector.multi_reduction <add>, %254, %cst_21 [1, 2] : vector<1x2x16xf32> to vector<1xf32>
    %256 = vector.shape_cast %255 : vector<1xf32> to vector<1x1x1xf32>
    %257 = vector.extract %256[0, 0, 0] : f32 from vector<1x1x1xf32>
    %258 = vector.broadcast %257 : f32 to vector<1x1xf32>
    %cst_22 = arith.constant 3.125000e-02 : f32
    %259 = vector.broadcast %cst_22 : f32 to vector<1x1xf32>
    %260 = arith.mulf %258, %259 : vector<1x1xf32>
    %cst_23 = arith.constant 9.99999974E-6 : f32
    %261 = vector.broadcast %cst_23 : f32 to vector<1x1xf32>
    %262 = arith.addf %260, %261 : vector<1x1xf32>
    %263 = math.rsqrt %262 : vector<1x1xf32>
    %264 = vector.broadcast %242 : f32 to vector<1x1xf32>
    %265 = arith.mulf %264, %263 : vector<1x1xf32>
    %266 = vector.broadcast %265 : vector<1x1xf32> to vector<2x16xf32>
    %267 = arith.mulf %252, %266 : vector<2x16xf32>
    %268 = vector.broadcast %243 : f32 to vector<2x16xf32>
    %269 = arith.addf %267, %268 : vector<2x16xf32>
    %cst_24 = arith.constant 0.000000e+00 : f32
    %270 = vector.broadcast %cst_24 : f32 to vector<2x16xf32>
    %271 = arith.maximumf %269, %270 : vector<2x16xf32>
    %c1_25 = arith.constant 1 : index
    %272 = memref.load %arg2[%c1_25] : memref<4xf32, #tpu.memory_space<smem>>
    %c1_26 = arith.constant 1 : index
    %273 = memref.load %arg3[%c1_26] : memref<4xf32, #tpu.memory_space<smem>>
    %274 = vector.shape_cast %147 : vector<2x16xf32> to vector<1x2x16xf32>
    %cst_27 = arith.constant dense<0.000000e+00> : vector<1xf32>
    %275 = vector.multi_reduction <add>, %274, %cst_27 [1, 2] : vector<1x2x16xf32> to vector<1xf32>
    %276 = vector.shape_cast %275 : vector<1xf32> to vector<1x1x1xf32>
    %277 = vector.extract %276[0, 0, 0] : f32 from vector<1x1x1xf32>
    %278 = vector.broadcast %277 : f32 to vector<1x1xf32>
    %cst_28 = arith.constant 3.125000e-02 : f32
    %279 = vector.broadcast %cst_28 : f32 to vector<1x1xf32>
    %280 = arith.mulf %278, %279 : vector<1x1xf32>
    %281 = vector.broadcast %280 : vector<1x1xf32> to vector<2x16xf32>
    %282 = arith.subf %147, %281 : vector<2x16xf32>
    %283 = arith.mulf %282, %282 : vector<2x16xf32>
    %284 = vector.shape_cast %283 : vector<2x16xf32> to vector<1x2x16xf32>
    %cst_29 = arith.constant dense<0.000000e+00> : vector<1xf32>
    %285 = vector.multi_reduction <add>, %284, %cst_29 [1, 2] : vector<1x2x16xf32> to vector<1xf32>
    %286 = vector.shape_cast %285 : vector<1xf32> to vector<1x1x1xf32>
    %287 = vector.extract %286[0, 0, 0] : f32 from vector<1x1x1xf32>
    %288 = vector.broadcast %287 : f32 to vector<1x1xf32>
    %cst_30 = arith.constant 3.125000e-02 : f32
    %289 = vector.broadcast %cst_30 : f32 to vector<1x1xf32>
    %290 = arith.mulf %288, %289 : vector<1x1xf32>
    %cst_31 = arith.constant 9.99999974E-6 : f32
    %291 = vector.broadcast %cst_31 : f32 to vector<1x1xf32>
    %292 = arith.addf %290, %291 : vector<1x1xf32>
    %293 = math.rsqrt %292 : vector<1x1xf32>
    %294 = vector.broadcast %272 : f32 to vector<1x1xf32>
    %295 = arith.mulf %294, %293 : vector<1x1xf32>
    %296 = vector.broadcast %295 : vector<1x1xf32> to vector<2x16xf32>
    %297 = arith.mulf %282, %296 : vector<2x16xf32>
    %298 = vector.broadcast %273 : f32 to vector<2x16xf32>
    %299 = arith.addf %297, %298 : vector<2x16xf32>
    %cst_32 = arith.constant 0.000000e+00 : f32
    %300 = vector.broadcast %cst_32 : f32 to vector<2x16xf32>
    %301 = arith.maximumf %299, %300 : vector<2x16xf32>
    %c2_33 = arith.constant 2 : index
    %302 = memref.load %arg2[%c2_33] : memref<4xf32, #tpu.memory_space<smem>>
    %c2_34 = arith.constant 2 : index
    %303 = memref.load %arg3[%c2_34] : memref<4xf32, #tpu.memory_space<smem>>
    %304 = vector.shape_cast %194 : vector<2x16xf32> to vector<1x2x16xf32>
    %cst_35 = arith.constant dense<0.000000e+00> : vector<1xf32>
    %305 = vector.multi_reduction <add>, %304, %cst_35 [1, 2] : vector<1x2x16xf32> to vector<1xf32>
    %306 = vector.shape_cast %305 : vector<1xf32> to vector<1x1x1xf32>
    %307 = vector.extract %306[0, 0, 0] : f32 from vector<1x1x1xf32>
    %308 = vector.broadcast %307 : f32 to vector<1x1xf32>
    %cst_36 = arith.constant 3.125000e-02 : f32
    %309 = vector.broadcast %cst_36 : f32 to vector<1x1xf32>
    %310 = arith.mulf %308, %309 : vector<1x1xf32>
    %311 = vector.broadcast %310 : vector<1x1xf32> to vector<2x16xf32>
    %312 = arith.subf %194, %311 : vector<2x16xf32>
    %313 = arith.mulf %312, %312 : vector<2x16xf32>
    %314 = vector.shape_cast %313 : vector<2x16xf32> to vector<1x2x16xf32>
    %cst_37 = arith.constant dense<0.000000e+00> : vector<1xf32>
    %315 = vector.multi_reduction <add>, %314, %cst_37 [1, 2] : vector<1x2x16xf32> to vector<1xf32>
    %316 = vector.shape_cast %315 : vector<1xf32> to vector<1x1x1xf32>
    %317 = vector.extract %316[0, 0, 0] : f32 from vector<1x1x1xf32>
    %318 = vector.broadcast %317 : f32 to vector<1x1xf32>
    %cst_38 = arith.constant 3.125000e-02 : f32
    %319 = vector.broadcast %cst_38 : f32 to vector<1x1xf32>
    %320 = arith.mulf %318, %319 : vector<1x1xf32>
    %cst_39 = arith.constant 9.99999974E-6 : f32
    %321 = vector.broadcast %cst_39 : f32 to vector<1x1xf32>
    %322 = arith.addf %320, %321 : vector<1x1xf32>
    %323 = math.rsqrt %322 : vector<1x1xf32>
    %324 = vector.broadcast %302 : f32 to vector<1x1xf32>
    %325 = arith.mulf %324, %323 : vector<1x1xf32>
    %326 = vector.broadcast %325 : vector<1x1xf32> to vector<2x16xf32>
    %327 = arith.mulf %312, %326 : vector<2x16xf32>
    %328 = vector.broadcast %303 : f32 to vector<2x16xf32>
    %329 = arith.addf %327, %328 : vector<2x16xf32>
    %cst_40 = arith.constant 0.000000e+00 : f32
    %330 = vector.broadcast %cst_40 : f32 to vector<2x16xf32>
    %331 = arith.maximumf %329, %330 : vector<2x16xf32>
    %c3_41 = arith.constant 3 : index
    %332 = memref.load %arg2[%c3_41] : memref<4xf32, #tpu.memory_space<smem>>
    %c3_42 = arith.constant 3 : index
    %333 = memref.load %arg3[%c3_42] : memref<4xf32, #tpu.memory_space<smem>>
    %334 = vector.shape_cast %241 : vector<2x16xf32> to vector<1x2x16xf32>
    %cst_43 = arith.constant dense<0.000000e+00> : vector<1xf32>
    %335 = vector.multi_reduction <add>, %334, %cst_43 [1, 2] : vector<1x2x16xf32> to vector<1xf32>
    %336 = vector.shape_cast %335 : vector<1xf32> to vector<1x1x1xf32>
    %337 = vector.extract %336[0, 0, 0] : f32 from vector<1x1x1xf32>
    %338 = vector.broadcast %337 : f32 to vector<1x1xf32>
    %cst_44 = arith.constant 3.125000e-02 : f32
    %339 = vector.broadcast %cst_44 : f32 to vector<1x1xf32>
    %340 = arith.mulf %338, %339 : vector<1x1xf32>
    %341 = vector.broadcast %340 : vector<1x1xf32> to vector<2x16xf32>
    %342 = arith.subf %241, %341 : vector<2x16xf32>
    %343 = arith.mulf %342, %342 : vector<2x16xf32>
    %344 = vector.shape_cast %343 : vector<2x16xf32> to vector<1x2x16xf32>
    %cst_45 = arith.constant dense<0.000000e+00> : vector<1xf32>
    %345 = vector.multi_reduction <add>, %344, %cst_45 [1, 2] : vector<1x2x16xf32> to vector<1xf32>
    %346 = vector.shape_cast %345 : vector<1xf32> to vector<1x1x1xf32>
    %347 = vector.extract %346[0, 0, 0] : f32 from vector<1x1x1xf32>
    %348 = vector.broadcast %347 : f32 to vector<1x1xf32>
    %cst_46 = arith.constant 3.125000e-02 : f32
    %349 = vector.broadcast %cst_46 : f32 to vector<1x1xf32>
    %350 = arith.mulf %348, %349 : vector<1x1xf32>
    %cst_47 = arith.constant 9.99999974E-6 : f32
    %351 = vector.broadcast %cst_47 : f32 to vector<1x1xf32>
    %352 = arith.addf %350, %351 : vector<1x1xf32>
    %353 = math.rsqrt %352 : vector<1x1xf32>
    %354 = vector.broadcast %332 : f32 to vector<1x1xf32>
    %355 = arith.mulf %354, %353 : vector<1x1xf32>
    %356 = vector.broadcast %355 : vector<1x1xf32> to vector<2x16xf32>
    %357 = arith.mulf %342, %356 : vector<2x16xf32>
    %358 = vector.broadcast %333 : f32 to vector<2x16xf32>
    %359 = arith.addf %357, %358 : vector<2x16xf32>
    %cst_48 = arith.constant 0.000000e+00 : f32
    %360 = vector.broadcast %cst_48 : f32 to vector<2x16xf32>
    %361 = arith.maximumf %359, %360 : vector<2x16xf32>
    %c1_i32_49 = arith.constant 1 : i32
    %362 = tpu.dynamic_rotate %271 by %c1_i32_49 dim 1 : vector<2x16xf32>, i32 -> vector<2x16xf32>
    %cst_50 = arith.constant 0.000000e+00 : f32
    %363 = vector.shape_cast %3 : vector<1x16xi1> to vector<1x16xi1>
    %364 = vector.broadcast %363 : vector<1x16xi1> to vector<2x16xi1>
    %365 = vector.broadcast %cst_50 : f32 to vector<2x16xf32>
    %366 = arith.select %364, %365, %362 : vector<2x16xi1>, vector<2x16xf32>
    %c15_i32_51 = arith.constant 15 : i32
    %367 = tpu.dynamic_rotate %271 by %c15_i32_51 dim 1 : vector<2x16xf32>, i32 -> vector<2x16xf32>
    %cst_52 = arith.constant 0.000000e+00 : f32
    %368 = vector.shape_cast %5 : vector<1x16xi1> to vector<1x16xi1>
    %369 = vector.broadcast %368 : vector<1x16xi1> to vector<2x16xi1>
    %370 = vector.broadcast %cst_52 : f32 to vector<2x16xf32>
    %371 = arith.select %369, %370, %367 : vector<2x16xi1>, vector<2x16xf32>
    %c1_i32_53 = arith.constant 1 : i32
    %372 = tpu.dynamic_rotate %301 by %c1_i32_53 dim 1 : vector<2x16xf32>, i32 -> vector<2x16xf32>
    %cst_54 = arith.constant 0.000000e+00 : f32
    %373 = vector.shape_cast %3 : vector<1x16xi1> to vector<1x16xi1>
    %374 = vector.broadcast %373 : vector<1x16xi1> to vector<2x16xi1>
    %375 = vector.broadcast %cst_54 : f32 to vector<2x16xf32>
    %376 = arith.select %374, %375, %372 : vector<2x16xi1>, vector<2x16xf32>
    %c15_i32_55 = arith.constant 15 : i32
    %377 = tpu.dynamic_rotate %301 by %c15_i32_55 dim 1 : vector<2x16xf32>, i32 -> vector<2x16xf32>
    %cst_56 = arith.constant 0.000000e+00 : f32
    %378 = vector.shape_cast %5 : vector<1x16xi1> to vector<1x16xi1>
    %379 = vector.broadcast %378 : vector<1x16xi1> to vector<2x16xi1>
    %380 = vector.broadcast %cst_56 : f32 to vector<2x16xf32>
    %381 = arith.select %379, %380, %377 : vector<2x16xi1>, vector<2x16xf32>
    %c1_i32_57 = arith.constant 1 : i32
    %382 = tpu.dynamic_rotate %331 by %c1_i32_57 dim 1 : vector<2x16xf32>, i32 -> vector<2x16xf32>
    %cst_58 = arith.constant 0.000000e+00 : f32
    %383 = vector.shape_cast %3 : vector<1x16xi1> to vector<1x16xi1>
    %384 = vector.broadcast %383 : vector<1x16xi1> to vector<2x16xi1>
    %385 = vector.broadcast %cst_58 : f32 to vector<2x16xf32>
    %386 = arith.select %384, %385, %382 : vector<2x16xi1>, vector<2x16xf32>
    %c15_i32_59 = arith.constant 15 : i32
    %387 = tpu.dynamic_rotate %331 by %c15_i32_59 dim 1 : vector<2x16xf32>, i32 -> vector<2x16xf32>
    %cst_60 = arith.constant 0.000000e+00 : f32
    %388 = vector.shape_cast %5 : vector<1x16xi1> to vector<1x16xi1>
    %389 = vector.broadcast %388 : vector<1x16xi1> to vector<2x16xi1>
    %390 = vector.broadcast %cst_60 : f32 to vector<2x16xf32>
    %391 = arith.select %389, %390, %387 : vector<2x16xi1>, vector<2x16xf32>
    %c1_i32_61 = arith.constant 1 : i32
    %392 = tpu.dynamic_rotate %361 by %c1_i32_61 dim 1 : vector<2x16xf32>, i32 -> vector<2x16xf32>
    %cst_62 = arith.constant 0.000000e+00 : f32
    %393 = vector.shape_cast %3 : vector<1x16xi1> to vector<1x16xi1>
    %394 = vector.broadcast %393 : vector<1x16xi1> to vector<2x16xi1>
    %395 = vector.broadcast %cst_62 : f32 to vector<2x16xf32>
    %396 = arith.select %394, %395, %392 : vector<2x16xi1>, vector<2x16xf32>
    %c15_i32_63 = arith.constant 15 : i32
    %397 = tpu.dynamic_rotate %361 by %c15_i32_63 dim 1 : vector<2x16xf32>, i32 -> vector<2x16xf32>
    %cst_64 = arith.constant 0.000000e+00 : f32
    %398 = vector.shape_cast %5 : vector<1x16xi1> to vector<1x16xi1>
    %399 = vector.broadcast %398 : vector<1x16xi1> to vector<2x16xi1>
    %400 = vector.broadcast %cst_64 : f32 to vector<2x16xf32>
    %401 = arith.select %399, %400, %397 : vector<2x16xi1>, vector<2x16xf32>
    %c0_65 = arith.constant 0 : index
    %402 = memref.load %arg4[%c0_65] : memref<48xf32, #tpu.memory_space<smem>>
    %403 = vector.broadcast %402 : f32 to vector<2x16xf32>
    %404 = arith.mulf %403, %366 : vector<2x16xf32>
    %c1_66 = arith.constant 1 : index
    %405 = memref.load %arg4[%c1_66] : memref<48xf32, #tpu.memory_space<smem>>
    %406 = vector.broadcast %405 : f32 to vector<2x16xf32>
    %407 = arith.mulf %406, %271 : vector<2x16xf32>
    %408 = arith.addf %404, %407 : vector<2x16xf32>
    %c2_67 = arith.constant 2 : index
    %409 = memref.load %arg4[%c2_67] : memref<48xf32, #tpu.memory_space<smem>>
    %410 = vector.broadcast %409 : f32 to vector<2x16xf32>
    %411 = arith.mulf %410, %371 : vector<2x16xf32>
    %412 = arith.addf %408, %411 : vector<2x16xf32>
    %c3_68 = arith.constant 3 : index
    %413 = memref.load %arg4[%c3_68] : memref<48xf32, #tpu.memory_space<smem>>
    %414 = vector.broadcast %413 : f32 to vector<2x16xf32>
    %415 = arith.mulf %414, %376 : vector<2x16xf32>
    %c4_69 = arith.constant 4 : index
    %416 = memref.load %arg4[%c4_69] : memref<48xf32, #tpu.memory_space<smem>>
    %417 = vector.broadcast %416 : f32 to vector<2x16xf32>
    %418 = arith.mulf %417, %301 : vector<2x16xf32>
    %419 = arith.addf %415, %418 : vector<2x16xf32>
    %c5_70 = arith.constant 5 : index
    %420 = memref.load %arg4[%c5_70] : memref<48xf32, #tpu.memory_space<smem>>
    %421 = vector.broadcast %420 : f32 to vector<2x16xf32>
    %422 = arith.mulf %421, %381 : vector<2x16xf32>
    %423 = arith.addf %419, %422 : vector<2x16xf32>
    %424 = arith.addf %412, %423 : vector<2x16xf32>
    %c6_71 = arith.constant 6 : index
    %425 = memref.load %arg4[%c6_71] : memref<48xf32, #tpu.memory_space<smem>>
    %426 = vector.broadcast %425 : f32 to vector<2x16xf32>
    %427 = arith.mulf %426, %386 : vector<2x16xf32>
    %c7_72 = arith.constant 7 : index
    %428 = memref.load %arg4[%c7_72] : memref<48xf32, #tpu.memory_space<smem>>
    %429 = vector.broadcast %428 : f32 to vector<2x16xf32>
    %430 = arith.mulf %429, %331 : vector<2x16xf32>
    %431 = arith.addf %427, %430 : vector<2x16xf32>
    %c8_73 = arith.constant 8 : index
    %432 = memref.load %arg4[%c8_73] : memref<48xf32, #tpu.memory_space<smem>>
    %433 = vector.broadcast %432 : f32 to vector<2x16xf32>
    %434 = arith.mulf %433, %391 : vector<2x16xf32>
    %435 = arith.addf %431, %434 : vector<2x16xf32>
    %436 = arith.addf %424, %435 : vector<2x16xf32>
    %c9_74 = arith.constant 9 : index
    %437 = memref.load %arg4[%c9_74] : memref<48xf32, #tpu.memory_space<smem>>
    %438 = vector.broadcast %437 : f32 to vector<2x16xf32>
    %439 = arith.mulf %438, %396 : vector<2x16xf32>
    %c10_75 = arith.constant 10 : index
    %440 = memref.load %arg4[%c10_75] : memref<48xf32, #tpu.memory_space<smem>>
    %441 = vector.broadcast %440 : f32 to vector<2x16xf32>
    %442 = arith.mulf %441, %361 : vector<2x16xf32>
    %443 = arith.addf %439, %442 : vector<2x16xf32>
    %c11_76 = arith.constant 11 : index
    %444 = memref.load %arg4[%c11_76] : memref<48xf32, #tpu.memory_space<smem>>
    %445 = vector.broadcast %444 : f32 to vector<2x16xf32>
    %446 = arith.mulf %445, %401 : vector<2x16xf32>
    %447 = arith.addf %443, %446 : vector<2x16xf32>
    %448 = arith.addf %436, %447 : vector<2x16xf32>
    %c12_77 = arith.constant 12 : index
    %449 = memref.load %arg4[%c12_77] : memref<48xf32, #tpu.memory_space<smem>>
    %450 = vector.broadcast %449 : f32 to vector<2x16xf32>
    %451 = arith.mulf %450, %366 : vector<2x16xf32>
    %c13_78 = arith.constant 13 : index
    %452 = memref.load %arg4[%c13_78] : memref<48xf32, #tpu.memory_space<smem>>
    %453 = vector.broadcast %452 : f32 to vector<2x16xf32>
    %454 = arith.mulf %453, %271 : vector<2x16xf32>
    %455 = arith.addf %451, %454 : vector<2x16xf32>
    %c14_79 = arith.constant 14 : index
    %456 = memref.load %arg4[%c14_79] : memref<48xf32, #tpu.memory_space<smem>>
    %457 = vector.broadcast %456 : f32 to vector<2x16xf32>
    %458 = arith.mulf %457, %371 : vector<2x16xf32>
    %459 = arith.addf %455, %458 : vector<2x16xf32>
    %c15_80 = arith.constant 15 : index
    %460 = memref.load %arg4[%c15_80] : memref<48xf32, #tpu.memory_space<smem>>
    %461 = vector.broadcast %460 : f32 to vector<2x16xf32>
    %462 = arith.mulf %461, %376 : vector<2x16xf32>
    %c16_81 = arith.constant 16 : index
    %463 = memref.load %arg4[%c16_81] : memref<48xf32, #tpu.memory_space<smem>>
    %464 = vector.broadcast %463 : f32 to vector<2x16xf32>
    %465 = arith.mulf %464, %301 : vector<2x16xf32>
    %466 = arith.addf %462, %465 : vector<2x16xf32>
    %c17_82 = arith.constant 17 : index
    %467 = memref.load %arg4[%c17_82] : memref<48xf32, #tpu.memory_space<smem>>
    %468 = vector.broadcast %467 : f32 to vector<2x16xf32>
    %469 = arith.mulf %468, %381 : vector<2x16xf32>
    %470 = arith.addf %466, %469 : vector<2x16xf32>
    %471 = arith.addf %459, %470 : vector<2x16xf32>
    %c18_83 = arith.constant 18 : index
    %472 = memref.load %arg4[%c18_83] : memref<48xf32, #tpu.memory_space<smem>>
    %473 = vector.broadcast %472 : f32 to vector<2x16xf32>
    %474 = arith.mulf %473, %386 : vector<2x16xf32>
    %c19_84 = arith.constant 19 : index
    %475 = memref.load %arg4[%c19_84] : memref<48xf32, #tpu.memory_space<smem>>
    %476 = vector.broadcast %475 : f32 to vector<2x16xf32>
    %477 = arith.mulf %476, %331 : vector<2x16xf32>
    %478 = arith.addf %474, %477 : vector<2x16xf32>
    %c20_85 = arith.constant 20 : index
    %479 = memref.load %arg4[%c20_85] : memref<48xf32, #tpu.memory_space<smem>>
    %480 = vector.broadcast %479 : f32 to vector<2x16xf32>
    %481 = arith.mulf %480, %391 : vector<2x16xf32>
    %482 = arith.addf %478, %481 : vector<2x16xf32>
    %483 = arith.addf %471, %482 : vector<2x16xf32>
    %c21_86 = arith.constant 21 : index
    %484 = memref.load %arg4[%c21_86] : memref<48xf32, #tpu.memory_space<smem>>
    %485 = vector.broadcast %484 : f32 to vector<2x16xf32>
    %486 = arith.mulf %485, %396 : vector<2x16xf32>
    %c22_87 = arith.constant 22 : index
    %487 = memref.load %arg4[%c22_87] : memref<48xf32, #tpu.memory_space<smem>>
    %488 = vector.broadcast %487 : f32 to vector<2x16xf32>
    %489 = arith.mulf %488, %361 : vector<2x16xf32>
    %490 = arith.addf %486, %489 : vector<2x16xf32>
    %c23_88 = arith.constant 23 : index
    %491 = memref.load %arg4[%c23_88] : memref<48xf32, #tpu.memory_space<smem>>
    %492 = vector.broadcast %491 : f32 to vector<2x16xf32>
    %493 = arith.mulf %492, %401 : vector<2x16xf32>
    %494 = arith.addf %490, %493 : vector<2x16xf32>
    %495 = arith.addf %483, %494 : vector<2x16xf32>
    %c24_89 = arith.constant 24 : index
    %496 = memref.load %arg4[%c24_89] : memref<48xf32, #tpu.memory_space<smem>>
    %497 = vector.broadcast %496 : f32 to vector<2x16xf32>
    %498 = arith.mulf %497, %366 : vector<2x16xf32>
    %c25_90 = arith.constant 25 : index
    %499 = memref.load %arg4[%c25_90] : memref<48xf32, #tpu.memory_space<smem>>
    %500 = vector.broadcast %499 : f32 to vector<2x16xf32>
    %501 = arith.mulf %500, %271 : vector<2x16xf32>
    %502 = arith.addf %498, %501 : vector<2x16xf32>
    %c26_91 = arith.constant 26 : index
    %503 = memref.load %arg4[%c26_91] : memref<48xf32, #tpu.memory_space<smem>>
    %504 = vector.broadcast %503 : f32 to vector<2x16xf32>
    %505 = arith.mulf %504, %371 : vector<2x16xf32>
    %506 = arith.addf %502, %505 : vector<2x16xf32>
    %c27_92 = arith.constant 27 : index
    %507 = memref.load %arg4[%c27_92] : memref<48xf32, #tpu.memory_space<smem>>
    %508 = vector.broadcast %507 : f32 to vector<2x16xf32>
    %509 = arith.mulf %508, %376 : vector<2x16xf32>
    %c28_93 = arith.constant 28 : index
    %510 = memref.load %arg4[%c28_93] : memref<48xf32, #tpu.memory_space<smem>>
    %511 = vector.broadcast %510 : f32 to vector<2x16xf32>
    %512 = arith.mulf %511, %301 : vector<2x16xf32>
    %513 = arith.addf %509, %512 : vector<2x16xf32>
    %c29_94 = arith.constant 29 : index
    %514 = memref.load %arg4[%c29_94] : memref<48xf32, #tpu.memory_space<smem>>
    %515 = vector.broadcast %514 : f32 to vector<2x16xf32>
    %516 = arith.mulf %515, %381 : vector<2x16xf32>
    %517 = arith.addf %513, %516 : vector<2x16xf32>
    %518 = arith.addf %506, %517 : vector<2x16xf32>
    %c30_95 = arith.constant 30 : index
    %519 = memref.load %arg4[%c30_95] : memref<48xf32, #tpu.memory_space<smem>>
    %520 = vector.broadcast %519 : f32 to vector<2x16xf32>
    %521 = arith.mulf %520, %386 : vector<2x16xf32>
    %c31_96 = arith.constant 31 : index
    %522 = memref.load %arg4[%c31_96] : memref<48xf32, #tpu.memory_space<smem>>
    %523 = vector.broadcast %522 : f32 to vector<2x16xf32>
    %524 = arith.mulf %523, %331 : vector<2x16xf32>
    %525 = arith.addf %521, %524 : vector<2x16xf32>
    %c32_97 = arith.constant 32 : index
    %526 = memref.load %arg4[%c32_97] : memref<48xf32, #tpu.memory_space<smem>>
    %527 = vector.broadcast %526 : f32 to vector<2x16xf32>
    %528 = arith.mulf %527, %391 : vector<2x16xf32>
    %529 = arith.addf %525, %528 : vector<2x16xf32>
    %530 = arith.addf %518, %529 : vector<2x16xf32>
    %c33_98 = arith.constant 33 : index
    %531 = memref.load %arg4[%c33_98] : memref<48xf32, #tpu.memory_space<smem>>
    %532 = vector.broadcast %531 : f32 to vector<2x16xf32>
    %533 = arith.mulf %532, %396 : vector<2x16xf32>
    %c34_99 = arith.constant 34 : index
    %534 = memref.load %arg4[%c34_99] : memref<48xf32, #tpu.memory_space<smem>>
    %535 = vector.broadcast %534 : f32 to vector<2x16xf32>
    %536 = arith.mulf %535, %361 : vector<2x16xf32>
    %537 = arith.addf %533, %536 : vector<2x16xf32>
    %c35_100 = arith.constant 35 : index
    %538 = memref.load %arg4[%c35_100] : memref<48xf32, #tpu.memory_space<smem>>
    %539 = vector.broadcast %538 : f32 to vector<2x16xf32>
    %540 = arith.mulf %539, %401 : vector<2x16xf32>
    %541 = arith.addf %537, %540 : vector<2x16xf32>
    %542 = arith.addf %530, %541 : vector<2x16xf32>
    %c36_101 = arith.constant 36 : index
    %543 = memref.load %arg4[%c36_101] : memref<48xf32, #tpu.memory_space<smem>>
    %544 = vector.broadcast %543 : f32 to vector<2x16xf32>
    %545 = arith.mulf %544, %366 : vector<2x16xf32>
    %c37_102 = arith.constant 37 : index
    %546 = memref.load %arg4[%c37_102] : memref<48xf32, #tpu.memory_space<smem>>
    %547 = vector.broadcast %546 : f32 to vector<2x16xf32>
    %548 = arith.mulf %547, %271 : vector<2x16xf32>
    %549 = arith.addf %545, %548 : vector<2x16xf32>
    %c38_103 = arith.constant 38 : index
    %550 = memref.load %arg4[%c38_103] : memref<48xf32, #tpu.memory_space<smem>>
    %551 = vector.broadcast %550 : f32 to vector<2x16xf32>
    %552 = arith.mulf %551, %371 : vector<2x16xf32>
    %553 = arith.addf %549, %552 : vector<2x16xf32>
    %c39_104 = arith.constant 39 : index
    %554 = memref.load %arg4[%c39_104] : memref<48xf32, #tpu.memory_space<smem>>
    %555 = vector.broadcast %554 : f32 to vector<2x16xf32>
    %556 = arith.mulf %555, %376 : vector<2x16xf32>
    %c40_105 = arith.constant 40 : index
    %557 = memref.load %arg4[%c40_105] : memref<48xf32, #tpu.memory_space<smem>>
    %558 = vector.broadcast %557 : f32 to vector<2x16xf32>
    %559 = arith.mulf %558, %301 : vector<2x16xf32>
    %560 = arith.addf %556, %559 : vector<2x16xf32>
    %c41_106 = arith.constant 41 : index
    %561 = memref.load %arg4[%c41_106] : memref<48xf32, #tpu.memory_space<smem>>
    %562 = vector.broadcast %561 : f32 to vector<2x16xf32>
    %563 = arith.mulf %562, %381 : vector<2x16xf32>
    %564 = arith.addf %560, %563 : vector<2x16xf32>
    %565 = arith.addf %553, %564 : vector<2x16xf32>
    %c42_107 = arith.constant 42 : index
    %566 = memref.load %arg4[%c42_107] : memref<48xf32, #tpu.memory_space<smem>>
    %567 = vector.broadcast %566 : f32 to vector<2x16xf32>
    %568 = arith.mulf %567, %386 : vector<2x16xf32>
    %c43_108 = arith.constant 43 : index
    %569 = memref.load %arg4[%c43_108] : memref<48xf32, #tpu.memory_space<smem>>
    %570 = vector.broadcast %569 : f32 to vector<2x16xf32>
    %571 = arith.mulf %570, %331 : vector<2x16xf32>
    %572 = arith.addf %568, %571 : vector<2x16xf32>
    %c44_109 = arith.constant 44 : index
    %573 = memref.load %arg4[%c44_109] : memref<48xf32, #tpu.memory_space<smem>>
    %574 = vector.broadcast %573 : f32 to vector<2x16xf32>
    %575 = arith.mulf %574, %391 : vector<2x16xf32>
    %576 = arith.addf %572, %575 : vector<2x16xf32>
    %577 = arith.addf %565, %576 : vector<2x16xf32>
    %c45_110 = arith.constant 45 : index
    %578 = memref.load %arg4[%c45_110] : memref<48xf32, #tpu.memory_space<smem>>
    %579 = vector.broadcast %578 : f32 to vector<2x16xf32>
    %580 = arith.mulf %579, %396 : vector<2x16xf32>
    %c46_111 = arith.constant 46 : index
    %581 = memref.load %arg4[%c46_111] : memref<48xf32, #tpu.memory_space<smem>>
    %582 = vector.broadcast %581 : f32 to vector<2x16xf32>
    %583 = arith.mulf %582, %361 : vector<2x16xf32>
    %584 = arith.addf %580, %583 : vector<2x16xf32>
    %c47_112 = arith.constant 47 : index
    %585 = memref.load %arg4[%c47_112] : memref<48xf32, #tpu.memory_space<smem>>
    %586 = vector.broadcast %585 : f32 to vector<2x16xf32>
    %587 = arith.mulf %586, %401 : vector<2x16xf32>
    %588 = arith.addf %584, %587 : vector<2x16xf32>
    %589 = arith.addf %577, %588 : vector<2x16xf32>
    %c0_113 = arith.constant 0 : index
    %590 = memref.load %arg5[%c0_113] : memref<4xf32, #tpu.memory_space<smem>>
    %c0_114 = arith.constant 0 : index
    %591 = memref.load %arg6[%c0_114] : memref<4xf32, #tpu.memory_space<smem>>
    %592 = vector.shape_cast %448 : vector<2x16xf32> to vector<1x2x16xf32>
    %cst_115 = arith.constant dense<0.000000e+00> : vector<1xf32>
    %593 = vector.multi_reduction <add>, %592, %cst_115 [1, 2] : vector<1x2x16xf32> to vector<1xf32>
    %594 = vector.shape_cast %593 : vector<1xf32> to vector<1x1x1xf32>
    %595 = vector.extract %594[0, 0, 0] : f32 from vector<1x1x1xf32>
    %596 = vector.broadcast %595 : f32 to vector<1x1xf32>
    %cst_116 = arith.constant 3.125000e-02 : f32
    %597 = vector.broadcast %cst_116 : f32 to vector<1x1xf32>
    %598 = arith.mulf %596, %597 : vector<1x1xf32>
    %599 = vector.broadcast %598 : vector<1x1xf32> to vector<2x16xf32>
    %600 = arith.subf %448, %599 : vector<2x16xf32>
    %601 = arith.mulf %600, %600 : vector<2x16xf32>
    %602 = vector.shape_cast %601 : vector<2x16xf32> to vector<1x2x16xf32>
    %cst_117 = arith.constant dense<0.000000e+00> : vector<1xf32>
    %603 = vector.multi_reduction <add>, %602, %cst_117 [1, 2] : vector<1x2x16xf32> to vector<1xf32>
    %604 = vector.shape_cast %603 : vector<1xf32> to vector<1x1x1xf32>
    %605 = vector.extract %604[0, 0, 0] : f32 from vector<1x1x1xf32>
    %606 = vector.broadcast %605 : f32 to vector<1x1xf32>
    %cst_118 = arith.constant 3.125000e-02 : f32
    %607 = vector.broadcast %cst_118 : f32 to vector<1x1xf32>
    %608 = arith.mulf %606, %607 : vector<1x1xf32>
    %cst_119 = arith.constant 9.99999974E-6 : f32
    %609 = vector.broadcast %cst_119 : f32 to vector<1x1xf32>
    %610 = arith.addf %608, %609 : vector<1x1xf32>
    %611 = math.rsqrt %610 : vector<1x1xf32>
    %612 = vector.broadcast %590 : f32 to vector<1x1xf32>
    %613 = arith.mulf %612, %611 : vector<1x1xf32>
    %614 = vector.broadcast %613 : vector<1x1xf32> to vector<2x16xf32>
    %615 = arith.mulf %600, %614 : vector<2x16xf32>
    %616 = vector.broadcast %591 : f32 to vector<2x16xf32>
    %617 = arith.addf %615, %616 : vector<2x16xf32>
    %618 = arith.addf %617, %7 : vector<2x16xf32>
    %cst_120 = arith.constant 0.000000e+00 : f32
    %619 = vector.broadcast %cst_120 : f32 to vector<2x16xf32>
    %620 = arith.maximumf %618, %619 : vector<2x16xf32>
    %c1_121 = arith.constant 1 : index
    %621 = memref.load %arg5[%c1_121] : memref<4xf32, #tpu.memory_space<smem>>
    %c1_122 = arith.constant 1 : index
    %622 = memref.load %arg6[%c1_122] : memref<4xf32, #tpu.memory_space<smem>>
    %623 = vector.shape_cast %495 : vector<2x16xf32> to vector<1x2x16xf32>
    %cst_123 = arith.constant dense<0.000000e+00> : vector<1xf32>
    %624 = vector.multi_reduction <add>, %623, %cst_123 [1, 2] : vector<1x2x16xf32> to vector<1xf32>
    %625 = vector.shape_cast %624 : vector<1xf32> to vector<1x1x1xf32>
    %626 = vector.extract %625[0, 0, 0] : f32 from vector<1x1x1xf32>
    %627 = vector.broadcast %626 : f32 to vector<1x1xf32>
    %cst_124 = arith.constant 3.125000e-02 : f32
    %628 = vector.broadcast %cst_124 : f32 to vector<1x1xf32>
    %629 = arith.mulf %627, %628 : vector<1x1xf32>
    %630 = vector.broadcast %629 : vector<1x1xf32> to vector<2x16xf32>
    %631 = arith.subf %495, %630 : vector<2x16xf32>
    %632 = arith.mulf %631, %631 : vector<2x16xf32>
    %633 = vector.shape_cast %632 : vector<2x16xf32> to vector<1x2x16xf32>
    %cst_125 = arith.constant dense<0.000000e+00> : vector<1xf32>
    %634 = vector.multi_reduction <add>, %633, %cst_125 [1, 2] : vector<1x2x16xf32> to vector<1xf32>
    %635 = vector.shape_cast %634 : vector<1xf32> to vector<1x1x1xf32>
    %636 = vector.extract %635[0, 0, 0] : f32 from vector<1x1x1xf32>
    %637 = vector.broadcast %636 : f32 to vector<1x1xf32>
    %cst_126 = arith.constant 3.125000e-02 : f32
    %638 = vector.broadcast %cst_126 : f32 to vector<1x1xf32>
    %639 = arith.mulf %637, %638 : vector<1x1xf32>
    %cst_127 = arith.constant 9.99999974E-6 : f32
    %640 = vector.broadcast %cst_127 : f32 to vector<1x1xf32>
    %641 = arith.addf %639, %640 : vector<1x1xf32>
    %642 = math.rsqrt %641 : vector<1x1xf32>
    %643 = vector.broadcast %621 : f32 to vector<1x1xf32>
    %644 = arith.mulf %643, %642 : vector<1x1xf32>
    %645 = vector.broadcast %644 : vector<1x1xf32> to vector<2x16xf32>
    %646 = arith.mulf %631, %645 : vector<2x16xf32>
    %647 = vector.broadcast %622 : f32 to vector<2x16xf32>
    %648 = arith.addf %646, %647 : vector<2x16xf32>
    %649 = arith.addf %648, %9 : vector<2x16xf32>
    %cst_128 = arith.constant 0.000000e+00 : f32
    %650 = vector.broadcast %cst_128 : f32 to vector<2x16xf32>
    %651 = arith.maximumf %649, %650 : vector<2x16xf32>
    %c2_129 = arith.constant 2 : index
    %652 = memref.load %arg5[%c2_129] : memref<4xf32, #tpu.memory_space<smem>>
    %c2_130 = arith.constant 2 : index
    %653 = memref.load %arg6[%c2_130] : memref<4xf32, #tpu.memory_space<smem>>
    %654 = vector.shape_cast %542 : vector<2x16xf32> to vector<1x2x16xf32>
    %cst_131 = arith.constant dense<0.000000e+00> : vector<1xf32>
    %655 = vector.multi_reduction <add>, %654, %cst_131 [1, 2] : vector<1x2x16xf32> to vector<1xf32>
    %656 = vector.shape_cast %655 : vector<1xf32> to vector<1x1x1xf32>
    %657 = vector.extract %656[0, 0, 0] : f32 from vector<1x1x1xf32>
    %658 = vector.broadcast %657 : f32 to vector<1x1xf32>
    %cst_132 = arith.constant 3.125000e-02 : f32
    %659 = vector.broadcast %cst_132 : f32 to vector<1x1xf32>
    %660 = arith.mulf %658, %659 : vector<1x1xf32>
    %661 = vector.broadcast %660 : vector<1x1xf32> to vector<2x16xf32>
    %662 = arith.subf %542, %661 : vector<2x16xf32>
    %663 = arith.mulf %662, %662 : vector<2x16xf32>
    %664 = vector.shape_cast %663 : vector<2x16xf32> to vector<1x2x16xf32>
    %cst_133 = arith.constant dense<0.000000e+00> : vector<1xf32>
    %665 = vector.multi_reduction <add>, %664, %cst_133 [1, 2] : vector<1x2x16xf32> to vector<1xf32>
    %666 = vector.shape_cast %665 : vector<1xf32> to vector<1x1x1xf32>
    %667 = vector.extract %666[0, 0, 0] : f32 from vector<1x1x1xf32>
    %668 = vector.broadcast %667 : f32 to vector<1x1xf32>
    %cst_134 = arith.constant 3.125000e-02 : f32
    %669 = vector.broadcast %cst_134 : f32 to vector<1x1xf32>
    %670 = arith.mulf %668, %669 : vector<1x1xf32>
    %cst_135 = arith.constant 9.99999974E-6 : f32
    %671 = vector.broadcast %cst_135 : f32 to vector<1x1xf32>
    %672 = arith.addf %670, %671 : vector<1x1xf32>
    %673 = math.rsqrt %672 : vector<1x1xf32>
    %674 = vector.broadcast %652 : f32 to vector<1x1xf32>
    %675 = arith.mulf %674, %673 : vector<1x1xf32>
    %676 = vector.broadcast %675 : vector<1x1xf32> to vector<2x16xf32>
    %677 = arith.mulf %662, %676 : vector<2x16xf32>
    %678 = vector.broadcast %653 : f32 to vector<2x16xf32>
    %679 = arith.addf %677, %678 : vector<2x16xf32>
    %680 = arith.addf %679, %11 : vector<2x16xf32>
    %cst_136 = arith.constant 0.000000e+00 : f32
    %681 = vector.broadcast %cst_136 : f32 to vector<2x16xf32>
    %682 = arith.maximumf %680, %681 : vector<2x16xf32>
    %c3_137 = arith.constant 3 : index
    %683 = memref.load %arg5[%c3_137] : memref<4xf32, #tpu.memory_space<smem>>
    %c3_138 = arith.constant 3 : index
    %684 = memref.load %arg6[%c3_138] : memref<4xf32, #tpu.memory_space<smem>>
    %685 = vector.shape_cast %589 : vector<2x16xf32> to vector<1x2x16xf32>
    %cst_139 = arith.constant dense<0.000000e+00> : vector<1xf32>
    %686 = vector.multi_reduction <add>, %685, %cst_139 [1, 2] : vector<1x2x16xf32> to vector<1xf32>
    %687 = vector.shape_cast %686 : vector<1xf32> to vector<1x1x1xf32>
    %688 = vector.extract %687[0, 0, 0] : f32 from vector<1x1x1xf32>
    %689 = vector.broadcast %688 : f32 to vector<1x1xf32>
    %cst_140 = arith.constant 3.125000e-02 : f32
    %690 = vector.broadcast %cst_140 : f32 to vector<1x1xf32>
    %691 = arith.mulf %689, %690 : vector<1x1xf32>
    %692 = vector.broadcast %691 : vector<1x1xf32> to vector<2x16xf32>
    %693 = arith.subf %589, %692 : vector<2x16xf32>
    %694 = arith.mulf %693, %693 : vector<2x16xf32>
    %695 = vector.shape_cast %694 : vector<2x16xf32> to vector<1x2x16xf32>
    %cst_141 = arith.constant dense<0.000000e+00> : vector<1xf32>
    %696 = vector.multi_reduction <add>, %695, %cst_141 [1, 2] : vector<1x2x16xf32> to vector<1xf32>
    %697 = vector.shape_cast %696 : vector<1xf32> to vector<1x1x1xf32>
    %698 = vector.extract %697[0, 0, 0] : f32 from vector<1x1x1xf32>
    %699 = vector.broadcast %698 : f32 to vector<1x1xf32>
    %cst_142 = arith.constant 3.125000e-02 : f32
    %700 = vector.broadcast %cst_142 : f32 to vector<1x1xf32>
    %701 = arith.mulf %699, %700 : vector<1x1xf32>
    %cst_143 = arith.constant 9.99999974E-6 : f32
    %702 = vector.broadcast %cst_143 : f32 to vector<1x1xf32>
    %703 = arith.addf %701, %702 : vector<1x1xf32>
    %704 = math.rsqrt %703 : vector<1x1xf32>
    %705 = vector.broadcast %683 : f32 to vector<1x1xf32>
    %706 = arith.mulf %705, %704 : vector<1x1xf32>
    %707 = vector.broadcast %706 : vector<1x1xf32> to vector<2x16xf32>
    %708 = arith.mulf %693, %707 : vector<2x16xf32>
    %709 = vector.broadcast %684 : f32 to vector<2x16xf32>
    %710 = arith.addf %708, %709 : vector<2x16xf32>
    %711 = arith.addf %710, %13 : vector<2x16xf32>
    %cst_144 = arith.constant 0.000000e+00 : f32
    %712 = vector.broadcast %cst_144 : f32 to vector<2x16xf32>
    %713 = arith.maximumf %711, %712 : vector<2x16xf32>
    %714 = vector.shape_cast %620 : vector<2x16xf32> to vector<2x1x16xf32>
    %715 = vector.shape_cast %651 : vector<2x16xf32> to vector<2x1x16xf32>
    %716 = vector.shape_cast %682 : vector<2x16xf32> to vector<2x1x16xf32>
    %717 = vector.shape_cast %713 : vector<2x16xf32> to vector<2x1x16xf32>
    %718 = tpu.concatenate %714, %715, %716, %717 in 1 : vector<2x1x16xf32>, vector<2x1x16xf32>, vector<2x1x16xf32>, vector<2x1x16xf32> -> vector<2x4x16xf32>
    %c0_145 = arith.constant 0 : index
    %c0_146 = arith.constant 0 : index
    %c0_147 = arith.constant 0 : index
    %719 = vector.load %arg7[%c0_145, %c0_146, %c0_147] : memref<2x4x16xf32, #tpu.memory_space<vmem>>, vector<2x4x16xf32>
    tpu.vector_store %arg7[%c0_145, %c0_146, %c0_147], %718 {strides = array<i32>} : memref<2x4x16xf32, #tpu.memory_space<vmem>>, vector<2x4x16xf32>,
    return
  }
}

</mosaic_0001>

<llo_original>
// kernel: tpu_custom_call.1
$region0: #{tpu_custom_call.1}
  #allocation0 [shape = 'u32[]', space=smem, size = 0x4, offset = 0x4, fixed_abs, tag = 'smem constant byte address 0x4 - core index']
  #allocation1 [shape = 'u32[144,128]{1,0:T(1,128)}', space=vmem, size = 0x12000, scoped, tag = 'internal scratch']
  %s0 = inlined_call_operand.hbm [shape: f32[2,4,16], index: 0, kind: input, shape index: {}, may-alias: {0,7}]
  %s1 = inlined_call_operand.vmem [shape: f32[48], index: 1, kind: input, shape index: {}]
  %s2 = inlined_call_operand.vmem [shape: f32[4], index: 2, kind: input, shape index: {}]
  %s3 = inlined_call_operand.vmem [shape: f32[4], index: 3, kind: input, shape index: {}]
  %s4 = inlined_call_operand.vmem [shape: f32[48], index: 4, kind: input, shape index: {}]
  %s5 = inlined_call_operand.vmem [shape: f32[4], index: 5, kind: input, shape index: {}]
  %s6 = inlined_call_operand.vmem [shape: f32[4], index: 6, kind: input, shape index: {}]
  %s7 = inlined_call_operand.hbm [shape: f32[2,4,16], index: 7, kind: output, shape index: {}, may-alias: {0,7}]
  %s8 = sld [smem:[#allocation0]]
  $region66: #{tpu_custom_call.1} parent=0
    _
  %s10 = ssub.s32 1, %s8
  %s11 = scalar_select 0, %s10, %s8
  $region1: #{tpu_custom_call.1} parent=0
    #allocation2 [shape = 'u8[4096]{0}', space=vmem, size = 0x1000, scoped, tag = 'input window, operand 0, single buffered']
    #allocation3 [shape = 's32[1]{0}', space=sflag, size = 0x4, scoped, tag = 'scoped memory for tpu_custom_call.1']
    #allocation4 [shape = 's32[1]{0}', space=sflag, size = 0x4, scoped, tag = 'scoped memory for tpu_custom_call.1']
    #allocation5 [shape = 's32[1]{0}', space=sflag, size = 0x4, scoped, tag = 'scoped memory for tpu_custom_call.1']
    #allocation6 [shape = 'u8[512]{0}', space=smem, size = 0x200, scoped, tag = 'input window, operand 1, single buffered']
    #allocation7 [shape = 'u8[512]{0}', space=smem, size = 0x200, scoped, tag = 'input window, operand 2, single buffered']
    #allocation8 [shape = 's32[1]{0}', space=sflag, size = 0x4, scoped, tag = 'scoped memory for tpu_custom_call.1']
    #allocation9 [shape = 'u8[512]{0}', space=smem, size = 0x200, scoped, tag = 'input window, operand 3, single buffered']
    #allocation10 [shape = 'u8[512]{0}', space=smem, size = 0x200, scoped, tag = 'input window, operand 4, single buffered']
    #allocation11 [shape = 's32[1]{0}', space=sflag, size = 0x4, scoped, tag = 'scoped memory for tpu_custom_call.1']
    #allocation12 [shape = 'u8[512]{0}', space=smem, size = 0x200, scoped, tag = 'input window, operand 5, single buffered']
    #allocation13 [shape = 'u8[512]{0}', space=smem, size = 0x200, scoped, tag = 'input window, operand 6, single buffered']
    #allocation14 [shape = 's32[1]{0}', space=sflag, size = 0x4, scoped, tag = 'scoped memory for tpu_custom_call.1']
    #allocation15 [shape = 'u8[4096]{0}', space=vmem, size = 0x1000, scoped, tag = 'output window, operand 0, single buffered']
    %12 = vsyncpa [#allocation3], 0
    %13 = vsyncpa [#allocation5], 0
    %14 = vsyncpa [#allocation8], 0
    %15 = vsyncpa [#allocation11], 0
    %16 = vsyncpa [#allocation14], 0
    %17 = vsyncpa [#allocation4], 0
    // Predicated region
    $region2: #{tpu_custom_call.1} parent=1 // pred_check
      _
    $region3: #{tpu_custom_call.1} parent=1 // pred_check_branch
      %19 = sbr.rel (0) target = $region5
    $region4: #{tpu_custom_call.1} parent=1 // pred_region
      %s21 = ssub.s32 128, 128
      %22 = vsyncadd [#allocation3], %s21
      %s23 = sshll.u32 [#allocation2], 4
      %s24 = int_to_ptr.vmem [resolvable:$true] %s23
      %29 = dma.hbm_to_vmem [thread:$0]  %s0, 128, %s24, [#allocation3], 64, 64, 4
    $region5: #{tpu_custom_call.1} parent=1 // pred_fallthru
      _
    // Predicated region
    $region6: #{tpu_custom_call.1} parent=1 // pred_check
      _
    $region7: #{tpu_custom_call.1} parent=1 // pred_check_branch
      %31 = sbr.rel (0) target = $region9
    $region8: #{tpu_custom_call.1} parent=1 // pred_region
      %s33 = ssub.s32 16, 16
      %34 = vsyncadd [#allocation5], %s33
      %s36 = sshll.u32 %s1, 4
      %s37 = int_to_ptr.vmem [resolvable:$true] %s36
      %39 = dma.vmem_to_smem %s37, 16, [#allocation6], [#allocation5]
    $region9: #{tpu_custom_call.1} parent=1 // pred_fallthru
      _
    // Predicated region
    $region10: #{tpu_custom_call.1} parent=1 // pred_check
      _
    $region11: #{tpu_custom_call.1} parent=1 // pred_check_branch
      %41 = sbr.rel (0) target = $region13
    $region12: #{tpu_custom_call.1} parent=1 // pred_region
      %s43 = ssub.s32 16, 16
      %44 = vsyncadd [#allocation8], %s43
      %s46 = sshll.u32 %s2, 4
      %s47 = int_to_ptr.vmem [resolvable:$true] %s46
      %49 = dma.vmem_to_smem %s47, 16, [#allocation7], [#allocation8]
    $region13: #{tpu_custom_call.1} parent=1 // pred_fallthru
      _
    // Predicated region
    $region14: #{tpu_custom_call.1} parent=1 // pred_check
      _
    $region15: #{tpu_custom_call.1} parent=1 // pred_check_branch
      %51 = sbr.rel (0) target = $region17
    $region16: #{tpu_custom_call.1} parent=1 // pred_region
      %s53 = ssub.s32 16, 16
      %54 = vsyncadd [#allocation8], %s53
      %s56 = sshll.u32 %s3, 4
      %s57 = int_to_ptr.vmem [resolvable:$true] %s56
      %59 = dma.vmem_to_smem %s57, 16, [#allocation9], [#allocation8]
    $region17: #{tpu_custom_call.1} parent=1 // pred_fallthru
      _
    // Predicated region
    $region18: #{tpu_custom_call.1} parent=1 // pred_check
      _
    $region19: #{tpu_custom_call.1} parent=1 // pred_check_branch
      %61 = sbr.rel (0) target = $region21
    $region20: #{tpu_custom_call.1} parent=1 // pred_region
      %s63 = ssub.s32 16, 16
      %64 = vsyncadd [#allocation11], %s63
      %s66 = sshll.u32 %s4, 4
      %s67 = int_to_ptr.vmem [resolvable:$true] %s66
      %69 = dma.vmem_to_smem %s67, 16, [#allocation10], [#allocation11]
    $region21: #{tpu_custom_call.1} parent=1 // pred_fallthru
      _
    // Predicated region
    $region22: #{tpu_custom_call.1} parent=1 // pred_check
      _
    $region23: #{tpu_custom_call.1} parent=1 // pred_check_branch
      %71 = sbr.rel (0) target = $region25
    $region24: #{tpu_custom_call.1} parent=1 // pred_region
      %s73 = ssub.s32 16, 16
      %74 = vsyncadd [#allocation11], %s73
      %s76 = sshll.u32 %s5, 4
      %s77 = int_to_ptr.vmem [resolvable:$true] %s76
      %79 = dma.vmem_to_smem %s77, 16, [#allocation12], [#allocation11]
    $region25: #{tpu_custom_call.1} parent=1 // pred_fallthru
      _
    // Predicated region
    $region26: #{tpu_custom_call.1} parent=1 // pred_check
      _
    $region27: #{tpu_custom_call.1} parent=1 // pred_check_branch
      %81 = sbr.rel (0) target = $region29
    $region28: #{tpu_custom_call.1} parent=1 // pred_region
      %s83 = ssub.s32 16, 16
      %84 = vsyncadd [#allocation14], %s83
      %s86 = sshll.u32 %s6, 4
      %s87 = int_to_ptr.vmem [resolvable:$true] %s86
      %89 = dma.vmem_to_smem %s87, 16, [#allocation13], [#allocation14]
    $region29: #{tpu_custom_call.1} parent=1 // pred_fallthru
      _
    // Predicated region
    $region30: #{tpu_custom_call.1} parent=1 // pred_check
      _
    $region31: #{tpu_custom_call.1} parent=1 // pred_check_branch
      %91 = sbr.rel (0) target = $region33
    $region32: #{tpu_custom_call.1} parent=1 // pred_region
      %92 = dma.done [#allocation3], 128
    $region33: #{tpu_custom_call.1} parent=1 // pred_fallthru
      _
    // Predicated region
    $region34: #{tpu_custom_call.1} parent=1 // pred_check
      _
    $region35: #{tpu_custom_call.1} parent=1 // pred_check_branch
      %94 = sbr.rel (0) target = $region37
    $region36: #{tpu_custom_call.1} parent=1 // pred_region
      %95 = dma.done [#allocation5], 16
    $region37: #{tpu_custom_call.1} parent=1 // pred_fallthru
      _
    // Predicated region
    $region38: #{tpu_custom_call.1} parent=1 // pred_check
      _
    $region39: #{tpu_custom_call.1} parent=1 // pred_check_branch
      %97 = sbr.rel (0) target = $region41
    $region40: #{tpu_custom_call.1} parent=1 // pred_region
      %98 = dma.done [#allocation8], 16
    $region41: #{tpu_custom_call.1} parent=1 // pred_fallthru
      _
    // Predicated region
    $region42: #{tpu_custom_call.1} parent=1 // pred_check
      _
    $region43: #{tpu_custom_call.1} parent=1 // pred_check_branch
      %100 = sbr.rel (0) target = $region45
    $region44: #{tpu_custom_call.1} parent=1 // pred_region
      %101 = dma.done [#allocation8], 16
    $region45: #{tpu_custom_call.1} parent=1 // pred_fallthru
      _
    // Predicated region
    $region46: #{tpu_custom_call.1} parent=1 // pred_check
      _
    $region47: #{tpu_custom_call.1} parent=1 // pred_check_branch
      %103 = sbr.rel (0) target = $region49
    $region48: #{tpu_custom_call.1} parent=1 // pred_region
      %104 = dma.done [#allocation11], 16
    $region49: #{tpu_custom_call.1} parent=1 // pred_fallthru
      _
    // Predicated region
    $region50: #{tpu_custom_call.1} parent=1 // pred_check
      _
    $region51: #{tpu_custom_call.1} parent=1 // pred_check_branch
      %106 = sbr.rel (0) target = $region53
    $region52: #{tpu_custom_call.1} parent=1 // pred_region
      %107 = dma.done [#allocation11], 16
    $region53: #{tpu_custom_call.1} parent=1 // pred_fallthru
      _
    // Predicated region
    $region54: #{tpu_custom_call.1} parent=1 // pred_check
      _
    $region55: #{tpu_custom_call.1} parent=1 // pred_check_branch
      %109 = sbr.rel (0) target = $region57
    $region56: #{tpu_custom_call.1} parent=1 // pred_region
      %110 = dma.done [#allocation14], 16
    $region57: #{tpu_custom_call.1} parent=1 // pred_fallthru
      _
    %111 = sfence
    %v112 = vld [vmem:[#allocation2] sm:$0xf]
    %v113 = vld [vmem:[#allocation2 + $0x4] sm:$0xf]
    %v114 = vlaneseq
    %v115 = vand.u32 %v114, 127
    %vm116 = vcmp.eq.s32.totalorder %v115, 0
    %vm117 = vcmp.eq.s32.totalorder %v115, 15
    %v120 = vrot.slane %v113, 7
    %vm121 = vcmask 1041409
    %v122 = vsel %vm121, %v120, %v112
    %vm124 = vcmask 1047680
    %125 = vrot.lane.b32.xlu0 %v122, 16
    %v126 = vpop.permute.xlu0 %125
    %v127 = vsel %vm124, %v126, %v122
    %128 = vrot.lane.b32.xlu0 %v127, 16
    %v129 = vpop.permute.xlu0 %128
    %v130 = vsel %vm124, %v129, %v122
    %v131 = vsel %vm116, 1, 0
    %vm132 = vcmp.eq.s32.totalorder %v131, 1
    %134 = vrot.lane.b32.xlu0 %v130, 113
    %v135 = vpop.permute.xlu0 %134
    %v137 = vsel %vm132, 0.0, %v135
    %v138 = vsel %vm117, 1, 0
    %vm139 = vcmp.eq.s32.totalorder %v138, 1
    %140 = vrot.lane.b32.xlu0 %v130, 127
    %v141 = vpop.permute.xlu0 %140
    %v143 = vsel %vm139, 0.0, %v141
    %v144 = vrot.slane %v112, 1
    %v145 = vsel %vm121, %v113, %v144
    %147 = vrot.lane.b32.xlu0 %v145, 16
    %v148 = vpop.permute.xlu0 %147
    %v149 = vsel %vm124, %v148, %v145
    %150 = vrot.lane.b32.xlu0 %v149, 16
    %v151 = vpop.permute.xlu0 %150
    %v152 = vsel %vm124, %v151, %v145
    %154 = vrot.lane.b32.xlu0 %v152, 113
    %v155 = vpop.permute.xlu0 %154
    %v157 = vsel %vm132, 0.0, %v155
    %158 = vrot.lane.b32.xlu0 %v152, 127
    %v159 = vpop.permute.xlu0 %158
    %v161 = vsel %vm139, 0.0, %v159
    %v162 = vrot.slane %v112, 2
    %v163 = vrot.slane %v113, 1
    %v164 = vsel %vm121, %v163, %v162
    %166 = vrot.lane.b32.xlu0 %v164, 16
    %v167 = vpop.permute.xlu0 %166
    %v168 = vsel %vm124, %v167, %v164
    %169 = vrot.lane.b32.xlu0 %v168, 16
    %v170 = vpop.permute.xlu0 %169
    %v171 = vsel %vm124, %v170, %v164
    %173 = vrot.lane.b32.xlu0 %v171, 113
    %v174 = vpop.permute.xlu0 %173
    %v176 = vsel %vm132, 0.0, %v174
    %177 = vrot.lane.b32.xlu0 %v171, 127
    %v178 = vpop.permute.xlu0 %177
    %v180 = vsel %vm139, 0.0, %v178
    %v181 = vrot.slane %v112, 3
    %v182 = vrot.slane %v113, 2
    %v183 = vsel %vm121, %v182, %v181
    %185 = vrot.lane.b32.xlu0 %v183, 16
    %v186 = vpop.permute.xlu0 %185
    %v187 = vsel %vm124, %v186, %v183
    %188 = vrot.lane.b32.xlu0 %v187, 16
    %v189 = vpop.permute.xlu0 %188
    %v190 = vsel %vm124, %v189, %v183
    %192 = vrot.lane.b32.xlu0 %v190, 113
    %v193 = vpop.permute.xlu0 %192
    %v195 = vsel %vm132, 0.0, %v193
    %196 = vrot.lane.b32.xlu0 %v190, 127
    %v197 = vpop.permute.xlu0 %196
    %v199 = vsel %vm139, 0.0, %v197
    %s200 = sld [smem:[#allocation6]]
    %v201 = vstv %s200
    %v202 = vmul.f32 %v201, %v137
    %s203 = sld [smem:[#allocation6 + $0x1]]
    %v204 = vstv %s203
    %v205 = vmul.f32 %v204, %v112
    %v206 = vmul.f32 %v204, %v113
    %v209 = vrot.slane %v206, 7
    %v210 = vsel %vm121, %v209, %v205
    %v212 = vadd.f32 %v202, %v210
    %s213 = sld [smem:[#allocation6 + $0x2]]
    %v214 = vstv %s213
    %v215 = vmul.f32 %v214, %v143
    %v216 = vadd.f32 %v212, %v215
    %s217 = sld [smem:[#allocation6 + $0x3]]
    %v218 = vstv %s217
    %v219 = vmul.f32 %v218, %v157
    %s220 = sld [smem:[#allocation6 + $0x4]]
    %v221 = vstv %s220
    %v222 = vmul.f32 %v221, %v112
    %v223 = vmul.f32 %v221, %v113
    %v226 = vrot.slane %v222, 1
    %v227 = vsel %vm121, %v223, %v226
    %v229 = vadd.f32 %v219, %v227
    %s230 = sld [smem:[#allocation6 + $0x5]]
    %v231 = vstv %s230
    %v232 = vmul.f32 %v231, %v161
    %v233 = vadd.f32 %v229, %v232
    %v234 = vadd.f32 %v216, %v233
    %s235 = sld [smem:[#allocation6 + $0x6]]
    %v236 = vstv %s235
    %v237 = vmul.f32 %v236, %v176
    %s238 = sld [smem:[#allocation6 + $0x7]]
    %v239 = vstv %s238
    %v240 = vmul.f32 %v239, %v112
    %v241 = vmul.f32 %v239, %v113
    %v244 = vrot.slane %v240, 2
    %v245 = vrot.slane %v241, 1
    %v246 = vsel %vm121, %v245, %v244
    %v248 = vadd.f32 %v237, %v246
    %s249 = sld [smem:[#allocation6 + $0x8]]
    %v250 = vstv %s249
    %v251 = vmul.f32 %v250, %v180
    %v252 = vadd.f32 %v248, %v251
    %v253 = vadd.f32 %v234, %v252
    %s254 = sld [smem:[#allocation6 + $0x9]]
    %v255 = vstv %s254
    %v256 = vmul.f32 %v255, %v195
    %s257 = sld [smem:[#allocation6 + $0xa]]
    %v258 = vstv %s257
    %v259 = vmul.f32 %v258, %v112
    %v260 = vmul.f32 %v258, %v113
    %v263 = vrot.slane %v259, 3
    %v264 = vrot.slane %v260, 2
    %v265 = vsel %vm121, %v264, %v263
    %v267 = vadd.f32 %v256, %v265
    %s268 = sld [smem:[#allocation6 + $0xb]]
    %v269 = vstv %s268
    %v270 = vmul.f32 %v269, %v199
    %v271 = vadd.f32 %v267, %v270
    %v272 = vadd.f32 %v253, %v271
    %s273 = sld [smem:[#allocation6 + $0xc]]
    %v274 = vstv %s273
    %v275 = vmul.f32 %v274, %v137
    %s276 = sld [smem:[#allocation6 + $0xd]]
    %v277 = vstv %s276
    %v278 = vmul.f32 %v277, %v112
    %v279 = vmul.f32 %v277, %v113
    %v282 = vrot.slane %v279, 7
    %v283 = vsel %vm121, %v282, %v278
    %v285 = vadd.f32 %v275, %v283
    %s286 = sld [smem:[#allocation6 + $0xe]]
    %v287 = vstv %s286
    %v288 = vmul.f32 %v287, %v143
    %v289 = vadd.f32 %v285, %v288
    %s290 = sld [smem:[#allocation6 + $0xf]]
    %v291 = vstv %s290
    %v292 = vmul.f32 %v291, %v157
    %s293 = sld [smem:[#allocation6 + $0x10]]
    %v294 = vstv %s293
    %v295 = vmul.f32 %v294, %v112
    %v296 = vmul.f32 %v294, %v113
    %v299 = vrot.slane %v295, 1
    %v300 = vsel %vm121, %v296, %v299
    %v302 = vadd.f32 %v292, %v300
    %s303 = sld [smem:[#allocation6 + $0x11]]
    %v304 = vstv %s303
    %v305 = vmul.f32 %v304, %v161
    %v306 = vadd.f32 %v302, %v305
    %v307 = vadd.f32 %v289, %v306
    %s308 = sld [smem:[#allocation6 + $0x12]]
    %v309 = vstv %s308
    %v310 = vmul.f32 %v309, %v176
    %s311 = sld [smem:[#allocation6 + $0x13]]
    %v312 = vstv %s311
    %v313 = vmul.f32 %v312, %v112
    %v314 = vmul.f32 %v312, %v113
    %v317 = vrot.slane %v313, 2
    %v318 = vrot.slane %v314, 1
    %v319 = vsel %vm121, %v318, %v317
    %v321 = vadd.f32 %v310, %v319
    %s322 = sld [smem:[#allocation6 + $0x14]]
    %v323 = vstv %s322
    %v324 = vmul.f32 %v323, %v180
    %v325 = vadd.f32 %v321, %v324
    %v326 = vadd.f32 %v307, %v325
    %s327 = sld [smem:[#allocation6 + $0x15]]
    %v328 = vstv %s327
    %v329 = vmul.f32 %v328, %v195
    %s330 = sld [smem:[#allocation6 + $0x16]]
    %v331 = vstv %s330
    %v332 = vmul.f32 %v331, %v112
    %v333 = vmul.f32 %v331, %v113
    %v336 = vrot.slane %v332, 3
    %v337 = vrot.slane %v333, 2
    %v338 = vsel %vm121, %v337, %v336
    %v340 = vadd.f32 %v329, %v338
    %s341 = sld [smem:[#allocation6 + $0x17]]
    %v342 = vstv %s341
    %v343 = vmul.f32 %v342, %v199
    %v344 = vadd.f32 %v340, %v343
    %v345 = vadd.f32 %v326, %v344
    %s346 = sld [smem:[#allocation6 + $0x18]]
    %v347 = vstv %s346
    %v348 = vmul.f32 %v347, %v137
    %s349 = sld [smem:[#allocation6 + $0x19]]
    %v350 = vstv %s349
    %v351 = vmul.f32 %v350, %v112
    %v352 = vmul.f32 %v350, %v113
    %v355 = vrot.slane %v352, 7
    %v356 = vsel %vm121, %v355, %v351
    %v358 = vadd.f32 %v348, %v356
    %s359 = sld [smem:[#allocation6 + $0x1a]]
    %v360 = vstv %s359
    %v361 = vmul.f32 %v360, %v143
    %v362 = vadd.f32 %v358, %v361
    %s363 = sld [smem:[#allocation6 + $0x1b]]
    %v364 = vstv %s363
    %v365 = vmul.f32 %v364, %v157
    %s366 = sld [smem:[#allocation6 + $0x1c]]
    %v367 = vstv %s366
    %v368 = vmul.f32 %v367, %v112
    %v369 = vmul.f32 %v367, %v113
    %v372 = vrot.slane %v368, 1
    %v373 = vsel %vm121, %v369, %v372
    %v375 = vadd.f32 %v365, %v373
    %s376 = sld [smem:[#allocation6 + $0x1d]]
    %v377 = vstv %s376
    %v378 = vmul.f32 %v377, %v161
    %v379 = vadd.f32 %v375, %v378
    %v380 = vadd.f32 %v362, %v379
    %s381 = sld [smem:[#allocation6 + $0x1e]]
    %v382 = vstv %s381
    %v383 = vmul.f32 %v382, %v176
    %s384 = sld [smem:[#allocation6 + $0x1f]]
    %v385 = vstv %s384
    %v386 = vmul.f32 %v385, %v112
    %v387 = vmul.f32 %v385, %v113
    %v390 = vrot.slane %v386, 2
    %v391 = vrot.slane %v387, 1
    %v392 = vsel %vm121, %v391, %v390
    %v394 = vadd.f32 %v383, %v392
    %s395 = sld [smem:[#allocation6 + $0x20]]
    %v396 = vstv %s395
    %v397 = vmul.f32 %v396, %v180
    %v398 = vadd.f32 %v394, %v397
    %v399 = vadd.f32 %v380, %v398
    %s400 = sld [smem:[#allocation6 + $0x21]]
    %v401 = vstv %s400
    %v402 = vmul.f32 %v401, %v195
    %s403 = sld [smem:[#allocation6 + $0x22]]
    %v404 = vstv %s403
    %v405 = vmul.f32 %v404, %v112
    %v406 = vmul.f32 %v404, %v113
    %v409 = vrot.slane %v405, 3
    %v410 = vrot.slane %v406, 2
    %v411 = vsel %vm121, %v410, %v409
    %v413 = vadd.f32 %v402, %v411
    %s414 = sld [smem:[#allocation6 + $0x23]]
    %v415 = vstv %s414
    %v416 = vmul.f32 %v415, %v199
    %v417 = vadd.f32 %v413, %v416
    %v418 = vadd.f32 %v399, %v417
    %s419 = sld [smem:[#allocation6 + $0x24]]
    %v420 = vstv %s419
    %v421 = vmul.f32 %v420, %v137
    %s422 = sld [smem:[#allocation6 + $0x25]]
    %v423 = vstv %s422
    %v424 = vmul.f32 %v423, %v112
    %v425 = vmul.f32 %v423, %v113
    %v428 = vrot.slane %v425, 7
    %v429 = vsel %vm121, %v428, %v424
    %v431 = vadd.f32 %v421, %v429
    %s432 = sld [smem:[#allocation6 + $0x26]]
    %v433 = vstv %s432
    %v434 = vmul.f32 %v433, %v143
    %v435 = vadd.f32 %v431, %v434
    %s436 = sld [smem:[#allocation6 + $0x27]]
    %v437 = vstv %s436
    %v438 = vmul.f32 %v437, %v157
    %s439 = sld [smem:[#allocation6 + $0x28]]
    %v440 = vstv %s439
    %v441 = vmul.f32 %v440, %v112
    %v442 = vmul.f32 %v440, %v113
    %v445 = vrot.slane %v441, 1
    %v446 = vsel %vm121, %v442, %v445
    %v448 = vadd.f32 %v438, %v446
    %s449 = sld [smem:[#allocation6 + $0x29]]
    %v450 = vstv %s449
    %v451 = vmul.f32 %v450, %v161
    %v452 = vadd.f32 %v448, %v451
    %v453 = vadd.f32 %v435, %v452
    %s454 = sld [smem:[#allocation6 + $0x2a]]
    %v455 = vstv %s454
    %v456 = vmul.f32 %v455, %v176
    %s457 = sld [smem:[#allocation6 + $0x2b]]
    %v458 = vstv %s457
    %v459 = vmul.f32 %v458, %v112
    %v460 = vmul.f32 %v458, %v113
    %v463 = vrot.slane %v459, 2
    %v464 = vrot.slane %v460, 1
    %v465 = vsel %vm121, %v464, %v463
    %v467 = vadd.f32 %v456, %v465
    %s468 = sld [smem:[#allocation6 + $0x2c]]
    %v469 = vstv %s468
    %v470 = vmul.f32 %v469, %v180
    %v471 = vadd.f32 %v467, %v470
    %v472 = vadd.f32 %v453, %v471
    %s473 = sld [smem:[#allocation6 + $0x2d]]
    %v474 = vstv %s473
    %v475 = vmul.f32 %v474, %v195
    %s476 = sld [smem:[#allocation6 + $0x2e]]
    %v477 = vstv %s476
    %v478 = vmul.f32 %v477, %v112
    %v479 = vmul.f32 %v477, %v113
    %v482 = vrot.slane %v478, 3
    %v483 = vrot.slane %v479, 2
    %v484 = vsel %vm121, %v483, %v482
    %v486 = vadd.f32 %v475, %v484
    %s487 = sld [smem:[#allocation6 + $0x2f]]
    %v488 = vstv %s487
    %v489 = vmul.f32 %v488, %v199
    %v490 = vadd.f32 %v486, %v489
    %v491 = vadd.f32 %v472, %v490
    %s492 = sld [smem:[#allocation7]]
    %s493 = sld [smem:[#allocation9]]
    %vm494 = vcmask 123904
    %v495 = vsel %vm494, %v272, 0.0
    %496 = vadd.xlane.f32.xlu0 %v495
    %v497 = vpop.xlane.xlu0 %496
    %v498 = vrot.slane %v497, 4
    %v499 = vadd.f32 %v497, %v498
    %v500 = vrot.slane %v499, 2
    %v501 = vadd.f32 %v499, %v500
    %v502 = vrot.slane %v501, 1
    %v503 = vadd.f32 %v501, %v502
    %s504 = vtos %v503
    %v505 = vstv %s504
    %v506 = vmul.f32 %v505, 0.03125
    %v507 = vsub.f32 %v272, %v506
    %v508 = vmul.f32 %v507, %v507
    %v509 = vsel %vm494, %v508, 0.0
    %510 = vadd.xlane.f32.xlu0 %v509
    %v511 = vpop.xlane.xlu0 %510
    %v512 = vrot.slane %v511, 4
    %v513 = vadd.f32 %v511, %v512
    %v514 = vrot.slane %v513, 2
    %v515 = vadd.f32 %v513, %v514
    %v516 = vrot.slane %v515, 1
    %v517 = vadd.f32 %v515, %v516
    %s518 = vtos %v517
    %v519 = vstv %s518
    %v520 = vmul.f32 %v519, 0.03125
    %v521 = vadd.f32 %v520, 1e-05
    %v522 = vrsqrt.pop %v521
    %v523 = vstv %s492
    %v524 = vmul.f32 %v523, %v522
    %v525 = vmul.f32 %v507, %v524
    %v526 = vstv %s493
    %v527 = vadd.f32 %v525, %v526
    %v528 = vmax.f32 %v527, 0.0
    %s529 = sld [smem:[#allocation7 + $0x1]]
    %s530 = sld [smem:[#allocation9 + $0x1]]
    %v531 = vsel %vm494, %v345, 0.0
    %532 = vadd.xlane.f32.xlu0 %v531
    %v533 = vpop.xlane.xlu0 %532
    %v534 = vrot.slane %v533, 4
    %v535 = vadd.f32 %v533, %v534
    %v536 = vrot.slane %v535, 2
    %v537 = vadd.f32 %v535, %v536
    %v538 = vrot.slane %v537, 1
    %v539 = vadd.f32 %v537, %v538
    %s540 = vtos %v539
    %v541 = vstv %s540
    %v542 = vmul.f32 %v541, 0.03125
    %v543 = vsub.f32 %v345, %v542
    %v544 = vmul.f32 %v543, %v543
    %v545 = vsel %vm494, %v544, 0.0
    %546 = vadd.xlane.f32.xlu0 %v545
    %v547 = vpop.xlane.xlu0 %546
    %v548 = vrot.slane %v547, 4
    %v549 = vadd.f32 %v547, %v548
    %v550 = vrot.slane %v549, 2
    %v551 = vadd.f32 %v549, %v550
    %v552 = vrot.slane %v551, 1
    %v553 = vadd.f32 %v551, %v552
    %s554 = vtos %v553
    %v555 = vstv %s554
    %v556 = vmul.f32 %v555, 0.03125
    %v557 = vadd.f32 %v556, 1e-05
    %v558 = vrsqrt.pop %v557
    %v559 = vstv %s529
    %v560 = vmul.f32 %v559, %v558
    %v561 = vmul.f32 %v543, %v560
    %v562 = vstv %s530
    %v563 = vadd.f32 %v561, %v562
    %v564 = vmax.f32 %v563, 0.0
    %s565 = sld [smem:[#allocation7 + $0x2]]
    %s566 = sld [smem:[#allocation9 + $0x2]]
    %v567 = vsel %vm494, %v418, 0.0
    %568 = vadd.xlane.f32.xlu0 %v567
    %v569 = vpop.xlane.xlu0 %568
    %v570 = vrot.slane %v569, 4
    %v571 = vadd.f32 %v569, %v570
    %v572 = vrot.slane %v571, 2
    %v573 = vadd.f32 %v571, %v572
    %v574 = vrot.slane %v573, 1
    %v575 = vadd.f32 %v573, %v574
    %s576 = vtos %v575
    %v577 = vstv %s576
    %v578 = vmul.f32 %v577, 0.03125
    %v579 = vsub.f32 %v418, %v578
    %v580 = vmul.f32 %v579, %v579
    %v581 = vsel %vm494, %v580, 0.0
    %582 = vadd.xlane.f32.xlu0 %v581
    %v583 = vpop.xlane.xlu0 %582
    %v584 = vrot.slane %v583, 4
    %v585 = vadd.f32 %v583, %v584
    %v586 = vrot.slane %v585, 2
    %v587 = vadd.f32 %v585, %v586
    %v588 = vrot.slane %v587, 1
    %v589 = vadd.f32 %v587, %v588
    %s590 = vtos %v589
    %v591 = vstv %s590
    %v592 = vmul.f32 %v591, 0.03125
    %v593 = vadd.f32 %v592, 1e-05
    %v594 = vrsqrt.pop %v593
    %v595 = vstv %s565
    %v596 = vmul.f32 %v595, %v594
    %v597 = vmul.f32 %v579, %v596
    %v598 = vstv %s566
    %v599 = vadd.f32 %v597, %v598
    %v600 = vmax.f32 %v599, 0.0
    %s601 = sld [smem:[#allocation7 + $0x3]]
    %s602 = sld [smem:[#allocation9 + $0x3]]
    %v603 = vsel %vm494, %v491, 0.0
    %604 = vadd.xlane.f32.xlu0 %v603
    %v605 = vpop.xlane.xlu0 %604
    %v606 = vrot.slane %v605, 4
    %v607 = vadd.f32 %v605, %v606
    %v608 = vrot.slane %v607, 2
    %v609 = vadd.f32 %v607, %v608
    %v610 = vrot.slane %v609, 1
    %v611 = vadd.f32 %v609, %v610
    %s612 = vtos %v611
    %v613 = vstv %s612
    %v614 = vmul.f32 %v613, 0.03125
    %v615 = vsub.f32 %v491, %v614
    %v616 = vmul.f32 %v615, %v615
    %v617 = vsel %vm494, %v616, 0.0
    %618 = vadd.xlane.f32.xlu0 %v617
    %v619 = vpop.xlane.xlu0 %618
    %v620 = vrot.slane %v619, 4
    %v621 = vadd.f32 %v619, %v620
    %v622 = vrot.slane %v621, 2
    %v623 = vadd.f32 %v621, %v622
    %v624 = vrot.slane %v623, 1
    %v625 = vadd.f32 %v623, %v624
    %s626 = vtos %v625
    %v627 = vstv %s626
    %v628 = vmul.f32 %v627, 0.03125
    %v629 = vadd.f32 %v628, 1e-05
    %v630 = vrsqrt.pop %v629
    %v631 = vstv %s601
    %v632 = vmul.f32 %v631, %v630
    %v633 = vmul.f32 %v615, %v632
    %v634 = vstv %s602
    %v635 = vadd.f32 %v633, %v634
    %v636 = vmax.f32 %v635, 0.0
    %637 = vrot.lane.b32.xlu0 %v528, 16
    %v638 = vpop.permute.xlu0 %637
    %v639 = vsel %vm124, %v638, %v528
    %640 = vrot.lane.b32.xlu0 %v639, 16
    %v641 = vpop.permute.xlu0 %640
    %v642 = vsel %vm124, %v641, %v528
    %644 = vrot.lane.b32.xlu0 %v642, 113
    %v645 = vpop.permute.xlu0 %644
    %v647 = vsel %vm132, 0.0, %v645
    %648 = vrot.lane.b32.xlu0 %v642, 127
    %v649 = vpop.permute.xlu0 %648
    %v651 = vsel %vm139, 0.0, %v649
    %652 = vrot.lane.b32.xlu0 %v564, 16
    %v653 = vpop.permute.xlu0 %652
    %v654 = vsel %vm124, %v653, %v564
    %655 = vrot.lane.b32.xlu0 %v654, 16
    %v656 = vpop.permute.xlu0 %655
    %v657 = vsel %vm124, %v656, %v564
    %659 = vrot.lane.b32.xlu0 %v657, 113
    %v660 = vpop.permute.xlu0 %659
    %v662 = vsel %vm132, 0.0, %v660
    %663 = vrot.lane.b32.xlu0 %v657, 127
    %v664 = vpop.permute.xlu0 %663
    %v666 = vsel %vm139, 0.0, %v664
    %667 = vrot.lane.b32.xlu0 %v600, 16
    %v668 = vpop.permute.xlu0 %667
    %v669 = vsel %vm124, %v668, %v600
    %670 = vrot.lane.b32.xlu0 %v669, 16
    %v671 = vpop.permute.xlu0 %670
    %v672 = vsel %vm124, %v671, %v600
    %674 = vrot.lane.b32.xlu0 %v672, 113
    %v675 = vpop.permute.xlu0 %674
    %v677 = vsel %vm132, 0.0, %v675
    %678 = vrot.lane.b32.xlu0 %v672, 127
    %v679 = vpop.permute.xlu0 %678
    %v681 = vsel %vm139, 0.0, %v679
    %682 = vrot.lane.b32.xlu0 %v636, 16
    %v683 = vpop.permute.xlu0 %682
    %v684 = vsel %vm124, %v683, %v636
    %685 = vrot.lane.b32.xlu0 %v684, 16
    %v686 = vpop.permute.xlu0 %685
    %v687 = vsel %vm124, %v686, %v636
    %689 = vrot.lane.b32.xlu0 %v687, 113
    %v690 = vpop.permute.xlu0 %689
    %v692 = vsel %vm132, 0.0, %v690
    %693 = vrot.lane.b32.xlu0 %v687, 127
    %v694 = vpop.permute.xlu0 %693
    %v696 = vsel %vm139, 0.0, %v694
    %s697 = sld [smem:[#allocation10]]
    %v698 = vstv %s697
    %v699 = vmul.f32 %v698, %v647
    %s700 = sld [smem:[#allocation10 + $0x1]]
    %v701 = vstv %s700
    %v702 = vmul.f32 %v701, %v528
    %v703 = vadd.f32 %v699, %v702
    %s704 = sld [smem:[#allocation10 + $0x2]]
    %v705 = vstv %s704
    %v706 = vmul.f32 %v705, %v651
    %v707 = vadd.f32 %v703, %v706
    %s708 = sld [smem:[#allocation10 + $0x3]]
    %v709 = vstv %s708
    %v710 = vmul.f32 %v709, %v662
    %s711 = sld [smem:[#allocation10 + $0x4]]
    %v712 = vstv %s711
    %v713 = vmul.f32 %v712, %v564
    %v714 = vadd.f32 %v710, %v713
    %s715 = sld [smem:[#allocation10 + $0x5]]
    %v716 = vstv %s715
    %v717 = vmul.f32 %v716, %v666
    %v718 = vadd.f32 %v714, %v717
    %v719 = vadd.f32 %v707, %v718
    %s720 = sld [smem:[#allocation10 + $0x6]]
    %v721 = vstv %s720
    %v722 = vmul.f32 %v721, %v677
    %s723 = sld [smem:[#allocation10 + $0x7]]
    %v724 = vstv %s723
    %v725 = vmul.f32 %v724, %v600
    %v726 = vadd.f32 %v722, %v725
    %s727 = sld [smem:[#allocation10 + $0x8]]
    %v728 = vstv %s727
    %v729 = vmul.f32 %v728, %v681
    %v730 = vadd.f32 %v726, %v729
    %v731 = vadd.f32 %v719, %v730
    %s732 = sld [smem:[#allocation10 + $0x9]]
    %v733 = vstv %s732
    %v734 = vmul.f32 %v733, %v692
    %s735 = sld [smem:[#allocation10 + $0xa]]
    %v736 = vstv %s735
    %v737 = vmul.f32 %v736, %v636
    %v738 = vadd.f32 %v734, %v737
    %s739 = sld [smem:[#allocation10 + $0xb]]
    %v740 = vstv %s739
    %v741 = vmul.f32 %v740, %v696
    %v742 = vadd.f32 %v738, %v741
    %v743 = vadd.f32 %v731, %v742
    %s744 = sld [smem:[#allocation10 + $0xc]]
    %v745 = vstv %s744
    %v746 = vmul.f32 %v745, %v647
    %s747 = sld [smem:[#allocation10 + $0xd]]
    %v748 = vstv %s747
    %v749 = vmul.f32 %v748, %v528
    %v750 = vadd.f32 %v746, %v749
    %s751 = sld [smem:[#allocation10 + $0xe]]
    %v752 = vstv %s751
    %v753 = vmul.f32 %v752, %v651
    %v754 = vadd.f32 %v750, %v753
    %s755 = sld [smem:[#allocation10 + $0xf]]
    %v756 = vstv %s755
    %v757 = vmul.f32 %v756, %v662
    %s758 = sld [smem:[#allocation10 + $0x10]]
    %v759 = vstv %s758
    %v760 = vmul.f32 %v759, %v564
    %v761 = vadd.f32 %v757, %v760
    %s762 = sld [smem:[#allocation10 + $0x11]]
    %v763 = vstv %s762
    %v764 = vmul.f32 %v763, %v666
    %v765 = vadd.f32 %v761, %v764
    %v766 = vadd.f32 %v754, %v765
    %s767 = sld [smem:[#allocation10 + $0x12]]
    %v768 = vstv %s767
    %v769 = vmul.f32 %v768, %v677
    %s770 = sld [smem:[#allocation10 + $0x13]]
    %v771 = vstv %s770
    %v772 = vmul.f32 %v771, %v600
    %v773 = vadd.f32 %v769, %v772
    %s774 = sld [smem:[#allocation10 + $0x14]]
    %v775 = vstv %s774
    %v776 = vmul.f32 %v775, %v681
    %v777 = vadd.f32 %v773, %v776
    %v778 = vadd.f32 %v766, %v777
    %s779 = sld [smem:[#allocation10 + $0x15]]
    %v780 = vstv %s779
    %v781 = vmul.f32 %v780, %v692
    %s782 = sld [smem:[#allocation10 + $0x16]]
    %v783 = vstv %s782
    %v784 = vmul.f32 %v783, %v636
    %v785 = vadd.f32 %v781, %v784
    %s786 = sld [smem:[#allocation10 + $0x17]]
    %v787 = vstv %s786
    %v788 = vmul.f32 %v787, %v696
    %v789 = vadd.f32 %v785, %v788
    %v790 = vadd.f32 %v778, %v789
    %s791 = sld [smem:[#allocation10 + $0x18]]
    %v792 = vstv %s791
    %v793 = vmul.f32 %v792, %v647
    %s794 = sld [smem:[#allocation10 + $0x19]]
    %v795 = vstv %s794
    %v796 = vmul.f32 %v795, %v528
    %v797 = vadd.f32 %v793, %v796
    %s798 = sld [smem:[#allocation10 + $0x1a]]
    %v799 = vstv %s798
    %v800 = vmul.f32 %v799, %v651
    %v801 = vadd.f32 %v797, %v800
    %s802 = sld [smem:[#allocation10 + $0x1b]]
    %v803 = vstv %s802
    %v804 = vmul.f32 %v803, %v662
    %s805 = sld [smem:[#allocation10 + $0x1c]]
    %v806 = vstv %s805
    %v807 = vmul.f32 %v806, %v564
    %v808 = vadd.f32 %v804, %v807
    %s809 = sld [smem:[#allocation10 + $0x1d]]
    %v810 = vstv %s809
    %v811 = vmul.f32 %v810, %v666
    %v812 = vadd.f32 %v808, %v811
    %v813 = vadd.f32 %v801, %v812
    %s814 = sld [smem:[#allocation10 + $0x1e]]
    %v815 = vstv %s814
    %v816 = vmul.f32 %v815, %v677
    %s817 = sld [smem:[#allocation10 + $0x1f]]
    %v818 = vstv %s817
    %v819 = vmul.f32 %v818, %v600
    %v820 = vadd.f32 %v816, %v819
    %s821 = sld [smem:[#allocation10 + $0x20]]
    %v822 = vstv %s821
    %v823 = vmul.f32 %v822, %v681
    %v824 = vadd.f32 %v820, %v823
    %v825 = vadd.f32 %v813, %v824
    %s826 = sld [smem:[#allocation10 + $0x21]]
    %v827 = vstv %s826
    %v828 = vmul.f32 %v827, %v692
    %s829 = sld [smem:[#allocation10 + $0x22]]
    %v830 = vstv %s829
    %v831 = vmul.f32 %v830, %v636
    %v832 = vadd.f32 %v828, %v831
    %s833 = sld [smem:[#allocation10 + $0x23]]
    %v834 = vstv %s833
    %v835 = vmul.f32 %v834, %v696
    %v836 = vadd.f32 %v832, %v835
    %v837 = vadd.f32 %v825, %v836
    %s838 = sld [smem:[#allocation10 + $0x24]]
    %v839 = vstv %s838
    %v840 = vmul.f32 %v839, %v647
    %s841 = sld [smem:[#allocation10 + $0x25]]
    %v842 = vstv %s841
    %v843 = vmul.f32 %v842, %v528
    %v844 = vadd.f32 %v840, %v843
    %s845 = sld [smem:[#allocation10 + $0x26]]
    %v846 = vstv %s845
    %v847 = vmul.f32 %v846, %v651
    %v848 = vadd.f32 %v844, %v847
    %s849 = sld [smem:[#allocation10 + $0x27]]
    %v850 = vstv %s849
    %v851 = vmul.f32 %v850, %v662
    %s852 = sld [smem:[#allocation10 + $0x28]]
    %v853 = vstv %s852
    %v854 = vmul.f32 %v853, %v564
    %v855 = vadd.f32 %v851, %v854
    %s856 = sld [smem:[#allocation10 + $0x29]]
    %v857 = vstv %s856
    %v858 = vmul.f32 %v857, %v666
    %v859 = vadd.f32 %v855, %v858
    %v860 = vadd.f32 %v848, %v859
    %s861 = sld [smem:[#allocation10 + $0x2a]]
    %v862 = vstv %s861
    %v863 = vmul.f32 %v862, %v677
    %s864 = sld [smem:[#allocation10 + $0x2b]]
    %v865 = vstv %s864
    %v866 = vmul.f32 %v865, %v600
    %v867 = vadd.f32 %v863, %v866
    %s868 = sld [smem:[#allocation10 + $0x2c]]
    %v869 = vstv %s868
    %v870 = vmul.f32 %v869, %v681
    %v871 = vadd.f32 %v867, %v870
    %v872 = vadd.f32 %v860, %v871
    %s873 = sld [smem:[#allocation10 + $0x2d]]
    %v874 = vstv %s873
    %v875 = vmul.f32 %v874, %v692
    %s876 = sld [smem:[#allocation10 + $0x2e]]
    %v877 = vstv %s876
    %v878 = vmul.f32 %v877, %v636
    %v879 = vadd.f32 %v875, %v878
    %s880 = sld [smem:[#allocation10 + $0x2f]]
    %v881 = vstv %s880
    %v882 = vmul.f32 %v881, %v696
    %v883 = vadd.f32 %v879, %v882
    %v884 = vadd.f32 %v872, %v883
    %s885 = sld [smem:[#allocation12]]
    %s886 = sld [smem:[#allocation13]]
    %v887 = vsel %vm494, %v743, 0.0
    %888 = vadd.xlane.f32.xlu0 %v887
    %v889 = vpop.xlane.xlu0 %888
    %v890 = vrot.slane %v889, 4
    %v891 = vadd.f32 %v889, %v890
    %v892 = vrot.slane %v891, 2
    %v893 = vadd.f32 %v891, %v892
    %v894 = vrot.slane %v893, 1
    %v895 = vadd.f32 %v893, %v894
    %s896 = vtos %v895
    %v897 = vstv %s896
    %v898 = vmul.f32 %v897, 0.03125
    %v899 = vsub.f32 %v743, %v898
    %v900 = vmul.f32 %v899, %v899
    %v901 = vsel %vm494, %v900, 0.0
    %902 = vadd.xlane.f32.xlu0 %v901
    %v903 = vpop.xlane.xlu0 %902
    %v904 = vrot.slane %v903, 4
    %v905 = vadd.f32 %v903, %v904
    %v906 = vrot.slane %v905, 2
    %v907 = vadd.f32 %v905, %v906
    %v908 = vrot.slane %v907, 1
    %v909 = vadd.f32 %v907, %v908
    %s910 = vtos %v909
    %v911 = vstv %s910
    %v912 = vmul.f32 %v911, 0.03125
    %v913 = vadd.f32 %v912, 1e-05
    %v914 = vrsqrt.pop %v913
    %v915 = vstv %s885
    %v916 = vmul.f32 %v915, %v914
    %v917 = vmul.f32 %v899, %v916
    %v918 = vstv %s886
    %v919 = vadd.f32 %v917, %v918
    %v920 = vadd.f32 %v919, %v122
    %v921 = vmax.f32 %v920, 0.0
    %s922 = sld [smem:[#allocation12 + $0x1]]
    %s923 = sld [smem:[#allocation13 + $0x1]]
    %v924 = vsel %vm494, %v790, 0.0
    %925 = vadd.xlane.f32.xlu0 %v924
    %v926 = vpop.xlane.xlu0 %925
    %v927 = vrot.slane %v926, 4
    %v928 = vadd.f32 %v926, %v927
    %v929 = vrot.slane %v928, 2
    %v930 = vadd.f32 %v928, %v929
    %v931 = vrot.slane %v930, 1
    %v932 = vadd.f32 %v930, %v931
    %s933 = vtos %v932
    %v934 = vstv %s933
    %v935 = vmul.f32 %v934, 0.03125
    %v936 = vsub.f32 %v790, %v935
    %v937 = vmul.f32 %v936, %v936
    %v938 = vsel %vm494, %v937, 0.0
    %939 = vadd.xlane.f32.xlu0 %v938
    %v940 = vpop.xlane.xlu0 %939
    %v941 = vrot.slane %v940, 4
    %v942 = vadd.f32 %v940, %v941
    %v943 = vrot.slane %v942, 2
    %v944 = vadd.f32 %v942, %v943
    %v945 = vrot.slane %v944, 1
    %v946 = vadd.f32 %v944, %v945
    %s947 = vtos %v946
    %v948 = vstv %s947
    %v949 = vmul.f32 %v948, 0.03125
    %v950 = vadd.f32 %v949, 1e-05
    %v951 = vrsqrt.pop %v950
    %v952 = vstv %s922
    %v953 = vmul.f32 %v952, %v951
    %v954 = vmul.f32 %v936, %v953
    %v955 = vstv %s923
    %v956 = vadd.f32 %v954, %v955
    %v957 = vadd.f32 %v956, %v145
    %v958 = vmax.f32 %v957, 0.0
    %s959 = sld [smem:[#allocation12 + $0x2]]
    %s960 = sld [smem:[#allocation13 + $0x2]]
    %v961 = vsel %vm494, %v837, 0.0
    %962 = vadd.xlane.f32.xlu0 %v961
    %v963 = vpop.xlane.xlu0 %962
    %v964 = vrot.slane %v963, 4
    %v965 = vadd.f32 %v963, %v964
    %v966 = vrot.slane %v965, 2
    %v967 = vadd.f32 %v965, %v966
    %v968 = vrot.slane %v967, 1
    %v969 = vadd.f32 %v967, %v968
    %s970 = vtos %v969
    %v971 = vstv %s970
    %v972 = vmul.f32 %v971, 0.03125
    %v973 = vsub.f32 %v837, %v972
    %v974 = vmul.f32 %v973, %v973
    %v975 = vsel %vm494, %v974, 0.0
    %976 = vadd.xlane.f32.xlu0 %v975
    %v977 = vpop.xlane.xlu0 %976
    %v978 = vrot.slane %v977, 4
    %v979 = vadd.f32 %v977, %v978
    %v980 = vrot.slane %v979, 2
    %v981 = vadd.f32 %v979, %v980
    %v982 = vrot.slane %v981, 1
    %v983 = vadd.f32 %v981, %v982
    %s984 = vtos %v983
    %v985 = vstv %s984
    %v986 = vmul.f32 %v985, 0.03125
    %v987 = vadd.f32 %v986, 1e-05
    %v988 = vrsqrt.pop %v987
    %v989 = vstv %s959
    %v990 = vmul.f32 %v989, %v988
    %v991 = vmul.f32 %v973, %v990
    %v992 = vstv %s960
    %v993 = vadd.f32 %v991, %v992
    %v994 = vadd.f32 %v993, %v164
    %v995 = vmax.f32 %v994, 0.0
    %s996 = sld [smem:[#allocation12 + $0x3]]
    %s997 = sld [smem:[#allocation13 + $0x3]]
    %v998 = vsel %vm494, %v884, 0.0
    %999 = vadd.xlane.f32.xlu0 %v998
    %v1000 = vpop.xlane.xlu0 %999
    %v1001 = vrot.slane %v1000, 4
    %v1002 = vadd.f32 %v1000, %v1001
    %v1003 = vrot.slane %v1002, 2
    %v1004 = vadd.f32 %v1002, %v1003
    %v1005 = vrot.slane %v1004, 1
    %v1006 = vadd.f32 %v1004, %v1005
    %s1007 = vtos %v1006
    %v1008 = vstv %s1007
    %v1009 = vmul.f32 %v1008, 0.03125
    %v1010 = vsub.f32 %v884, %v1009
    %v1011 = vmul.f32 %v1010, %v1010
    %v1012 = vsel %vm494, %v1011, 0.0
    %1013 = vadd.xlane.f32.xlu0 %v1012
    %v1014 = vpop.xlane.xlu0 %1013
    %v1015 = vrot.slane %v1014, 4
    %v1016 = vadd.f32 %v1014, %v1015
    %v1017 = vrot.slane %v1016, 2
    %v1018 = vadd.f32 %v1016, %v1017
    %v1019 = vrot.slane %v1018, 1
    %v1020 = vadd.f32 %v1018, %v1019
    %s1021 = vtos %v1020
    %v1022 = vstv %s1021
    %v1023 = vmul.f32 %v1022, 0.03125
    %v1024 = vadd.f32 %v1023, 1e-05
    %v1025 = vrsqrt.pop %v1024
    %v1026 = vstv %s996
    %v1027 = vmul.f32 %v1026, %v1025
    %v1028 = vmul.f32 %v1010, %v1027
    %v1029 = vstv %s997
    %v1030 = vadd.f32 %v1028, %v1029
    %v1031 = vadd.f32 %v1030, %v183
    %v1032 = vmax.f32 %v1031, 0.0
    %v1035 = vunpack.c.l.s4 1966171168
    %v1036 = vunpack.c.0.s8 %v1035
    %v1037 = vlaneseq
    %v1038 = vshrl.u32 %v1037, 7
    %v1039 = vsub.s32 %v1036, %v1038
    %v1040 = vrot.slane %v921, %v1039
    %v1041 = vcombine.high %v1040, %v1040
    %v1043 = vunpack.c.l.s4 1966171168
    %v1044 = vunpack.c.0.s8 %v1043
    %v1045 = vlaneseq
    %v1046 = vshrl.u32 %v1045, 7
    %v1047 = vsub.s32 %v1044, %v1046
    %v1048 = vrot.slane %v1040, %v1047
    %v1050 = vunpack.c.l.s4 1966171168
    %v1051 = vunpack.c.0.s8 %v1050
    %v1052 = vlaneseq
    %v1053 = vshrl.u32 %v1052, 7
    %v1054 = vsub.s32 %v1051, %v1053
    %v1055 = vrot.slane %v1041, %v1054
    %v1060 = vunpack.c.l.s4 1966171168
    %v1061 = vunpack.c.0.s8 %v1060
    %v1062 = vlaneseq
    %v1063 = vshrl.u32 %v1062, 7
    %v1064 = vsub.s32 %v1061, %v1063
    %v1065 = vrot.slane %v958, %v1064
    %v1066 = vcombine.high %v1065, %v1065
    %v1068 = vunpack.c.l.s4 1966171168
    %v1069 = vunpack.c.0.s8 %v1068
    %v1070 = vlaneseq
    %v1071 = vshrl.u32 %v1070, 7
    %v1072 = vsub.s32 %v1069, %v1071
    %v1073 = vrot.slane %v1065, %v1072
    %v1075 = vunpack.c.l.s4 1966171168
    %v1076 = vunpack.c.0.s8 %v1075
    %v1077 = vlaneseq
    %v1078 = vshrl.u32 %v1077, 7
    %v1079 = vsub.s32 %v1076, %v1078
    %v1080 = vrot.slane %v1066, %v1079
    %v1083 = vunpack.c.l.s4 1966171168
    %v1084 = vunpack.c.0.s8 %v1083
    %v1085 = vlaneseq
    %v1086 = vshrl.u32 %v1085, 7
    %v1087 = vsub.s32 %v1084, %v1086
    %v1088 = vrot.slane %v995, %v1087
    %v1089 = vcombine.high %v1088, %v1088
    %v1091 = vunpack.c.l.s4 1966171168
    %v1092 = vunpack.c.0.s8 %v1091
    %v1093 = vlaneseq
    %v1094 = vshrl.u32 %v1093, 7
    %v1095 = vsub.s32 %v1092, %v1094
    %v1096 = vrot.slane %v1088, %v1095
    %v1098 = vunpack.c.l.s4 1966171168
    %v1099 = vunpack.c.0.s8 %v1098
    %v1100 = vlaneseq
    %v1101 = vshrl.u32 %v1100, 7
    %v1102 = vsub.s32 %v1099, %v1101
    %v1103 = vrot.slane %v1089, %v1102
    %v1106 = vunpack.c.l.s4 1966171168
    %v1107 = vunpack.c.0.s8 %v1106
    %v1108 = vlaneseq
    %v1109 = vshrl.u32 %v1108, 7
    %v1110 = vsub.s32 %v1107, %v1109
    %v1111 = vrot.slane %v1032, %v1110
    %v1112 = vcombine.high %v1111, %v1111
    %v1114 = vunpack.c.l.s4 1966171168
    %v1115 = vunpack.c.0.s8 %v1114
    %v1116 = vlaneseq
    %v1117 = vshrl.u32 %v1116, 7
    %v1118 = vsub.s32 %v1115, %v1117
    %v1119 = vrot.slane %v1111, %v1118
    %v1121 = vunpack.c.l.s4 1966171168
    %v1122 = vunpack.c.0.s8 %v1121
    %v1123 = vlaneseq
    %v1124 = vshrl.u32 %v1123, 7
    %v1125 = vsub.s32 %v1122, %v1124
    %v1126 = vrot.slane %v1112, %v1125
    %v1127 = vlaneseq
    %v1128 = vshrl.u32 %v1127, 7
    %v1129 = vsub.s32 0, %v1128
    %v1130 = vrot.slane %v1073, %v1129
    %v1131 = vlaneseq
    %v1132 = vshrl.u32 %v1131, 7
    %v1133 = vsub.s32 0, %v1132
    %v1134 = vrot.slane %v1080, %v1133
    %v1137 = vlaneseq
    %v1138 = vshrl.u32 %v1137, 7
    %v1139 = vsub.s32 0, %v1138
    %v1140 = vrot.slane %v1096, %v1139
    %v1141 = vlaneseq
    %v1142 = vshrl.u32 %v1141, 7
    %v1143 = vsub.s32 0, %v1142
    %v1144 = vrot.slane %v1103, %v1143
    %v1147 = vlaneseq
    %v1148 = vshrl.u32 %v1147, 7
    %v1149 = vsub.s32 0, %v1148
    %v1150 = vrot.slane %v1119, %v1149
    %v1151 = vlaneseq
    %v1152 = vshrl.u32 %v1151, 7
    %v1153 = vsub.s32 0, %v1152
    %v1154 = vrot.slane %v1126, %v1153
    %vm1157 = vcmask 1040384
    %v1158 = vsel %vm1157, %v1048, %v1130
    %v1159 = vsel %vm1157, %v1055, %v1134
    %vm1160 = vcmask 1041408
    %v1161 = vsel %vm1160, %v1158, %v1140
    %v1162 = vsel %vm1160, %v1159, %v1144
    %vm1163 = vcmask 1042432
    %v1164 = vsel %vm1163, %v1161, %v1150
    %v1165 = vsel %vm1163, %v1162, %v1154
    %vm1166 = vcmask 125952
    %1167 = vst.msk [vmem:[#allocation15] sm:$0xf] %vm1166, %v1164
    %1168 = vst.msk [vmem:[#allocation15 + $0x4] sm:$0xf] %vm1166, %v1165
    // Predicated region
    $region58: #{tpu_custom_call.1} parent=1 // pred_check
      _
    $region59: #{tpu_custom_call.1} parent=1 // pred_check_branch
      %1170 = sbr.rel (0) target = $region61
    $region60: #{tpu_custom_call.1} parent=1 // pred_region
      %s1172 = ssub.s32 128, 128
      %1173 = vsyncadd [#allocation4], %s1172
      %s1174 = sshll.u32 [#allocation15], 4
      %s1175 = int_to_ptr.vmem [resolvable:$true] %s1174
      %1180 = dma.vmem_to_hbm [thread:$0]  %s1175, 128, %s7, [#allocation4], 64, 64, 4
    $region61: #{tpu_custom_call.1} parent=1 // pred_fallthru
      _
    // Predicated region
    $region62: #{tpu_custom_call.1} parent=1 // pred_check
      _
    $region63: #{tpu_custom_call.1} parent=1 // pred_check_branch
      %1182 = sbr.rel (0) target = $region65
    $region64: #{tpu_custom_call.1} parent=1 // pred_region
      %1183 = dma.done [#allocation4], 128
    $region65: #{tpu_custom_call.1} parent=1 // pred_fallthru
      _
    %1184 = vsyncpa [#allocation3], 1
    %1185 = vsyncpa [#allocation4], 1
    %1186 = vsyncpa [#allocation5], 1
    %1187 = vsyncpa [#allocation8], 1
    %1188 = vsyncpa [#allocation11], 1
    %1189 = vsyncpa [#allocation14], 1

</llo_original>
